<compile_context>
chip_gen: v7x
topology: tpu7x:2x2x1
jax: 0.10.0
libtpu: 0.0.40
codegen_flags: <defaults>
</compile_context>

<pallas_src>
import math
import functools

import jax
import jax.numpy as jnp
from jax.experimental import pallas as pl
from jax.experimental.pallas import tpu as pltpu


def _cross_attn_kernel(rgb_ref, ir_ref,
                       wq_ref, bq_ref, wk_ref, wv_ref, wo_ref, bo_ref,
                       out_ref, k_scr, v_scr, cat_scr, *, h, d_k):
    f32, bf16 = jnp.float32, jnp.bfloat16
    eps = 1e-5  # torch.nn.LayerNorm default

    def norm(x):  # plain LayerNorm; gamma/beta are folded into the projections
        mu = jnp.mean(x, axis=-1, keepdims=True)
        xc = x - mu
        var = jnp.mean(xc * xc, axis=-1, keepdims=True)
        return xc * jax.lax.rsqrt(var + eps)

    # ---- K/V for this batch element: computed once per batch (qi == 0) and
    #      reused by every query tile (query axis is "arbitrary"/sequential). --
    @pl.when(pl.program_id(1) == 0)
    def _():
        ir_n = norm(ir_ref[...].astype(f32)).astype(bf16)          # (n, d_model)
        for head in range(h):                                      # static, small
            k_scr[head] = jnp.dot(ir_n, wk_ref[head],
                                  preferred_element_type=f32).astype(bf16)
            v_scr[head] = jnp.dot(ir_n, wv_ref[head],
                                  preferred_element_type=f32).astype(bf16)

    # ---- per query-tile attention ----
    rgb_n = norm(rgb_ref[...].astype(f32)).astype(bf16)            # (tq, d_model)
    for head in range(h):
        # Per-head projection: head-sliced weights via a free leading-dim ref
        # index (no lane slicing of a fused q tensor).
        qh = (jnp.dot(rgb_n, wq_ref[head], preferred_element_type=f32)
              + bq_ref[head]).astype(bf16)                          # (tq, d_k)

        # q @ k^T with contraction over the last dims (no explicit transpose).
        att = jax.lax.dot_general(qh, k_scr[head],
                                  (((1,), (1,)), ((), ())),
                                  preferred_element_type=f32)       # (tq, n)
        att = att - jnp.max(att, axis=-1, keepdims=True)
        p = jnp.exp(att)                                            # un-normalized
        s = jnp.sum(p, axis=-1, keepdims=True)                      # (tq, 1)
        # attn_drop: identity (eval mode)

        ph = jnp.dot(p.astype(bf16), v_scr[head],
                     preferred_element_type=f32)                    # (tq, d_k)
        # Post-PV normalization: n*d_k elementwise work instead of n*n.
        ph = ph * pl.reciprocal(s, approx=True)

        # Build the head-concat buffer in VMEM (lane offset head*d_k).
        cat_scr[:, head * d_k:(head + 1) * d_k] = ph.astype(bf16)

    # Single fused output projection over all heads (K = d_model on the MXU).
    out = (jnp.dot(cat_scr[...], wo_ref[...], preferred_element_type=f32)
           + bo_ref[...])
    # resid_drop: identity (eval mode)
    out_ref[...] = out.astype(out_ref.dtype)


def _fold_params(params, *, h, d_model):
    """Fold LN affine, biases and 1/sqrt(d_k) into the projection params.

    Weights are stored transposed, i.e. (in_features, out_features), and

        LN(x) @ W + c = n(x) @ (g[:, None] * W) + (b @ W + c).

    * The query side additionally carries the 1/sqrt(d_k) attention scale.
    * The full K bias (beta2 @ Wk + bk) shifts every logit of a softmax row by
      the same amount -> softmax-invariant -> dropped entirely.
    * The full V bias (beta2 @ Wv + bv) contributes exactly (bias @ Wo) to the
      output because softmax rows sum to one -> folded into bo.
    Folding is done in f32; matmul weights are cast to bf16 once at the end.
    """
    d_k = d_model // h
    scale = 1.0 / math.sqrt(d_k)
    f32, bf16 = jnp.float32, jnp.bfloat16
    g1 = params["ln1_g"].reshape(d_model)
    b1 = params["ln1_b"].reshape(d_model)
    g2 = params["ln2_g"].reshape(d_model)
    b2 = params["ln2_b"].reshape(d_model)

    wq = (params["wq"] * g1[:, None]) * scale
    bq = (b1 @ params["wq"] + params["bq"].reshape(d_model)) * scale
    wk = params["wk"] * g2[:, None]                       # K bias dropped
    wv = params["wv"] * g2[:, None]
    cv = b2 @ params["wv"] + params["bv"].reshape(d_model)  # constant V offset
    bo = params["bo"].reshape(d_model) + cv @ params["wo"]  # folded into bo

    heads = lambda w: w.reshape(d_model, h, d_k).transpose(1, 0, 2)  # (h, dm, dk)
    return {
        "wq3": heads(wq).astype(bf16),
        "bq3": bq.reshape(h, 1, d_k).astype(f32),
        "wk3": heads(wk).astype(bf16),
        "wv3": heads(wv).astype(bf16),
        "wo": params["wo"].astype(bf16),
        "bo": bo.reshape(1, d_model).astype(f32),
    }


def cross_attention_only_tir(rgb, ir, params, *, h, tq=None,
                             vmem_limit_bytes=None):
    """rgb, ir: (b_s, n, d_model). Returns (b_s, n, d_model)."""
    b_s, n, d_model = rgb.shape
    assert d_model % h == 0
    d_k = d_model // h
    assert n % 8 == 0, "n (= H*W) must be sublane-aligned"

    if tq is None:
        # Largest multiple-of-8 divisor of n, capped at 256 query rows/step:
        # large enough to amortize per-step overhead, small enough that the
        # per-head (tq, n) attention tile stays in VMEM for big n.
        tq = max(t for t in range(8, min(n, 256) + 1, 8) if n % t == 0)
    assert n % tq == 0 and tq % 8 == 0
    nqt = n // tq

    if vmem_limit_bytes is None:
        # 48 MiB: above the v5e/v6e scoped defaults (16/32 MiB) and safely
        # below v7x's 64 MiB physical VMEM.  Raise toward ~100 MiB on
        # v5e/v6e for very large tiles.
        vmem_limit_bytes = 48 * 1024 * 1024

    fp = _fold_params(params, h=h, d_model=d_model)

    # Fold batch into the row (sublane) dimension -> row/lane-dense DMAs.
    # (Passing bf16 activations here halves the dominant HBM traffic; f32 is
    #  accepted too — the kernel normalizes in f32 and casts for the MXU.)
    rgb2 = rgb.reshape(b_s * n, d_model)
    ir2 = ir.reshape(b_s * n, d_model)

    kernel = functools.partial(_cross_attn_kernel, h=h, d_k=d_k)

    q_spec = pl.BlockSpec((tq, d_model), lambda b, qi: (b * nqt + qi, 0))
    kv_spec = pl.BlockSpec((n, d_model), lambda b, qi: (b, 0))
    full = lambda shp: pl.BlockSpec(shp, lambda b, qi: (0,) * len(shp))
    bf16 = jnp.bfloat16

    out2 = pl.pallas_call(
        kernel,
        out_shape=jax.ShapeDtypeStruct((b_s * n, d_model), rgb.dtype),
        grid_spec=pltpu.PrefetchScalarGridSpec(
            num_scalar_prefetch=0,
            grid=(b_s, nqt),                         # (batch, query tile)
            in_specs=[
                q_spec,                              # rgb rows of this q tile
                kv_spec,                             # ir rows of this batch
                full((h, d_model, d_k)),             # Wq (folded, bf16)
                full((h, 1, d_k)),                   # bq (folded, f32)
                full((h, d_model, d_k)),             # Wk (folded, bf16)
                full((h, d_model, d_k)),             # Wv (folded, bf16)
                full((d_model, d_model)),            # Wo (bf16)
                full((1, d_model)),                  # bo (folded, f32)
            ],
            out_specs=q_spec,
            scratch_shapes=[
                pltpu.VMEM((h, n, d_k), bf16),       # per-batch K cache
                pltpu.VMEM((h, n, d_k), bf16),       # per-batch V cache
                pltpu.VMEM((tq, d_model), bf16),     # head-concat buffer
            ],
        ),
        compiler_params=pltpu.CompilerParams(
            dimension_semantics=("parallel", "arbitrary"),
            vmem_limit_bytes=vmem_limit_bytes),
    )(rgb2, ir2,
      fp["wq3"], fp["bq3"], fp["wk3"], fp["wv3"], fp["wo"], fp["bo"])

    return out2.reshape(b_s, n, d_model)


def _reference(rgb, ir, params, *, h):
    """Pure-JAX f32 reference mirroring the PyTorch forward (eval mode)."""
    b_s, n, d = rgb.shape
    d_k = d // h
    eps = 1e-5

    def ln(x, g, b):
        mu = jnp.mean(x, -1, keepdims=True)
        var = jnp.mean((x - mu) ** 2, -1, keepdims=True)
        return (x - mu) / jnp.sqrt(var + eps) * g + b

    rgb_n = ln(rgb, params["ln1_g"], params["ln1_b"])
    ir_n = ln(ir, params["ln2_g"], params["ln2_b"])
    q = rgb_n @ params["wq"] + params["bq"]
    k = ir_n @ params["wk"] + params["bk"]
    v = ir_n @ params["wv"] + params["bv"]
    q = q.reshape(b_s, n, h, d_k).transpose(0, 2, 1, 3)
    k = k.reshape(b_s, n, h, d_k).transpose(0, 2, 3, 1)
    v = v.reshape(b_s, n, h, d_k).transpose(0, 2, 1, 3)
    att = jnp.matmul(q, k) / math.sqrt(d_k)
    att = jax.nn.softmax(att, axis=-1)
    out = jnp.matmul(att, v).transpose(0, 2, 1, 3).reshape(b_s, n, h * d_k)
    return out @ params["wo"] + params["bo"]


def init_params(key, d_model):
    """Example params (f32). Weights stored transposed (in, out). Gamma/beta
    and biases get small nontrivial values so the host-side folding (including
    the dropped K bias and the V-bias -> bo fold) is actually exercised."""
    ks = jax.random.split(key, 10)
    std = 0.02
    mk_w = lambda k: jax.random.normal(k, (d_model, d_model), jnp.float32) * std
    mk_b = lambda k: jax.random.normal(k, (d_model,), jnp.float32) * std
    return {
        "ln1_g": 1.0 + 0.1 * jax.random.normal(ks[0], (d_model,), jnp.float32),
        "ln1_b": 0.1 * jax.random.normal(ks[1], (d_model,), jnp.float32),
        "ln2_g": 1.0 + 0.1 * jax.random.normal(ks[2], (d_model,), jnp.float32),
        "ln2_b": 0.1 * jax.random.normal(ks[3], (d_model,), jnp.float32),
        "wq": mk_w(ks[4]), "bq": mk_b(ks[5]),
        "wk": mk_w(ks[6]), "bk": mk_b(ks[7]),
        "wv": mk_w(ks[8]), "bv": mk_b(ks[9]),
        "wo": mk_w(jax.random.fold_in(key, 100)),
        "bo": mk_b(jax.random.fold_in(key, 101)),
    }


if __name__ == "__main__":
    b_s, n, d_model, h = 2, 16, 32, 4   # n = H*W of a 4x4 feature map

    key = jax.random.PRNGKey(0)
    k_rgb, k_ir, k_par = jax.random.split(key, 3)
    rgb = jax.random.normal(k_rgb, (b_s, n, d_model), jnp.float32)
    ir = jax.random.normal(k_ir, (b_s, n, d_model), jnp.float32)
    params = init_params(k_par, d_model)

    # tq=8 -> grid (2, 2): exercises query-tile pipelining and the per-batch
    # K/V caching path (qi == 0 vs qi == 1).
    out = cross_attention_only_tir(rgb, ir, params, h=h, tq=8)
    out = jax.block_until_ready(out)

    ref = _reference(rgb, ir, params, h=h)
    assert out.shape == (b_s, n, d_model)
    # bf16 MXU operands + approx reciprocal -> loosened tolerance vs f32 ref.
    assert jnp.allclose(out, ref, atol=1e-3, rtol=2e-2), "mismatch vs reference"

    print("KERNEL_OK")
</pallas_src>

<mosaic_0001>
module attributes {stable_mosaic.version = 11 : i64} {
  func.func @_cross_attn_kernel(%arg0: i32, %arg1: i32, %arg2: memref<8x32xf32, #tpu.memory_space<vmem>>, %arg3: memref<16x32xf32, #tpu.memory_space<vmem>>, %arg4: memref<4x32x8xbf16, #tpu.memory_space<vmem>>, %arg5: memref<4x1x8xf32, #tpu.memory_space<vmem>>, %arg6: memref<4x32x8xbf16, #tpu.memory_space<vmem>>, %arg7: memref<4x32x8xbf16, #tpu.memory_space<vmem>>, %arg8: memref<32x32xbf16, #tpu.memory_space<vmem>>, %arg9: memref<1x32xf32, #tpu.memory_space<vmem>>, %arg10: memref<8x32xf32, #tpu.memory_space<vmem>>, %arg11: memref<4x16x8xbf16, #tpu.memory_space<vmem>>, %arg12: memref<4x16x8xbf16, #tpu.memory_space<vmem>>, %arg13: memref<8x32xbf16, #tpu.memory_space<vmem>>) attributes {dimension_semantics = [#tpu.dimension_semantics<parallel>, #tpu.dimension_semantics<arbitrary>], iteration_bounds = array<i64: 2, 2>, scalar_prefetch = 0 : i64, scratch_operands = 3 : i64, tpu.core_type = #tpu.core_type<tc>, window_params = [{transform_indices = @transform_0, window_bounds = array<i64: 8, 32>}, {transform_indices = @transform_1, window_bounds = array<i64: 16, 32>}, {pipeline_mode = #tpu.pipeline_mode<synchronous>, transform_indices = @transform_2, window_bounds = array<i64: 4, 32, 8>}, {pipeline_mode = #tpu.pipeline_mode<synchronous>, transform_indices = @transform_3, window_bounds = array<i64: 4, 1, 8>}, {pipeline_mode = #tpu.pipeline_mode<synchronous>, transform_indices = @transform_4, window_bounds = array<i64: 4, 32, 8>}, {pipeline_mode = #tpu.pipeline_mode<synchronous>, transform_indices = @transform_5, window_bounds = array<i64: 4, 32, 8>}, {pipeline_mode = #tpu.pipeline_mode<synchronous>, transform_indices = @transform_6, window_bounds = array<i64: 32, 32>}, {pipeline_mode = #tpu.pipeline_mode<synchronous>, transform_indices = @transform_7, window_bounds = array<i64: 1, 32>}, {transform_indices = @transform_8, window_bounds = array<i64: 8, 32>}]} {
    %c0_i32 = arith.constant 0 : i32
    %0 = arith.cmpi eq, %arg1, %c0_i32 : i32
    %1 = arith.extui %0 : i1 to i32
    %c0_i32_0 = arith.constant 0 : i32
    %2 = arith.cmpi ne, %1, %c0_i32_0 : i32
    scf.if %2 {
      %c0_85 = arith.constant 0 : index
      %c0_86 = arith.constant 0 : index
      %136 = vector.load %arg3[%c0_85, %c0_86] : memref<16x32xf32, #tpu.memory_space<vmem>>, vector<16x32xf32>
      %cst_87 = arith.constant dense<0.000000e+00> : vector<16xf32>
      %137 = vector.multi_reduction <add>, %136, %cst_87 [1] : vector<16x32xf32> to vector<16xf32>
      %138 = vector.shape_cast %137 : vector<16xf32> to vector<16x1xf32>
      %cst_88 = arith.constant 3.200000e+01 : f32
      %139 = vector.broadcast %cst_88 : f32 to vector<16x1xf32>
      %140 = arith.divf %138, %139 : vector<16x1xf32>
      %141 = vector.broadcast %140 : vector<16x1xf32> to vector<16x32xf32>
      %142 = arith.subf %136, %141 : vector<16x32xf32>
      %143 = arith.mulf %142, %142 : vector<16x32xf32>
      %cst_89 = arith.constant dense<0.000000e+00> : vector<16xf32>
      %144 = vector.multi_reduction <add>, %143, %cst_89 [1] : vector<16x32xf32> to vector<16xf32>
      %145 = vector.shape_cast %144 : vector<16xf32> to vector<16x1xf32>
      %cst_90 = arith.constant 3.200000e+01 : f32
      %146 = vector.broadcast %cst_90 : f32 to vector<16x1xf32>
      %147 = arith.divf %145, %146 : vector<16x1xf32>
      %cst_91 = arith.constant 9.99999974E-6 : f32
      %148 = vector.broadcast %cst_91 : f32 to vector<16x1xf32>
      %149 = arith.addf %147, %148 : vector<16x1xf32>
      %150 = math.rsqrt %149 : vector<16x1xf32>
      %151 = vector.broadcast %150 : vector<16x1xf32> to vector<16x32xf32>
      %152 = arith.mulf %142, %151 : vector<16x32xf32>
      %153 = arith.truncf %152 : vector<16x32xf32> to vector<16x32xbf16>
      %c0_92 = arith.constant 0 : index
      %c0_93 = arith.constant 0 : index
      %c0_94 = arith.constant 0 : index
      %154 = vector.load %arg6[%c0_92, %c0_93, %c0_94] : memref<4x32x8xbf16, #tpu.memory_space<vmem>>, vector<1x32x8xbf16>
      %155 = vector.shape_cast %154 : vector<1x32x8xbf16> to vector<32x8xbf16>
      %cst_95 = arith.constant dense<0.000000e+00> : vector<16x8xf32>
      %156 = tpu.matmul %153, %155, %cst_95 {dimension_numbers = #tpu.dot_dimension_numbers<[1], [0], [0], [1], [0, 0, 1, 1], [], []>} : vector<16x32xbf16>, vector<32x8xbf16>, vector<16x8xf32> -> vector<16x8xf32>
      %157 = arith.truncf %156 : vector<16x8xf32> to vector<16x8xbf16>
      %c0_96 = arith.constant 0 : index
      %c0_97 = arith.constant 0 : index
      %c0_98 = arith.constant 0 : index
      %158 = vector.load %arg11[%c0_96, %c0_97, %c0_98] : memref<4x16x8xbf16, #tpu.memory_space<vmem>>, vector<1x16x8xbf16>
      %159 = vector.shape_cast %158 : vector<1x16x8xbf16> to vector<16x8xbf16>
      %160 = vector.shape_cast %157 : vector<16x8xbf16> to vector<1x16x8xbf16>
      tpu.vector_store %arg11[%c0_96, %c0_97, %c0_98], %160 {strides = array<i32>} : memref<4x16x8xbf16, #tpu.memory_space<vmem>>, vector<1x16x8xbf16>,
      %c0_99 = arith.constant 0 : index
      %c0_100 = arith.constant 0 : index
      %c0_101 = arith.constant 0 : index
      %161 = vector.load %arg7[%c0_99, %c0_100, %c0_101] : memref<4x32x8xbf16, #tpu.memory_space<vmem>>, vector<1x32x8xbf16>
      %162 = vector.shape_cast %161 : vector<1x32x8xbf16> to vector<32x8xbf16>
      %cst_102 = arith.constant dense<0.000000e+00> : vector<16x8xf32>
      %163 = tpu.matmul %153, %162, %cst_102 {dimension_numbers = #tpu.dot_dimension_numbers<[1], [0], [0], [1], [0, 0, 1, 1], [], []>} : vector<16x32xbf16>, vector<32x8xbf16>, vector<16x8xf32> -> vector<16x8xf32>
      %164 = arith.truncf %163 : vector<16x8xf32> to vector<16x8xbf16>
      %c0_103 = arith.constant 0 : index
      %c0_104 = arith.constant 0 : index
      %c0_105 = arith.constant 0 : index
      %165 = vector.load %arg12[%c0_103, %c0_104, %c0_105] : memref<4x16x8xbf16, #tpu.memory_space<vmem>>, vector<1x16x8xbf16>
      %166 = vector.shape_cast %165 : vector<1x16x8xbf16> to vector<16x8xbf16>
      %167 = vector.shape_cast %164 : vector<16x8xbf16> to vector<1x16x8xbf16>
      tpu.vector_store %arg12[%c0_103, %c0_104, %c0_105], %167 {strides = array<i32>} : memref<4x16x8xbf16, #tpu.memory_space<vmem>>, vector<1x16x8xbf16>,
      %c1_106 = arith.constant 1 : index
      %c0_107 = arith.constant 0 : index
      %c0_108 = arith.constant 0 : index
      %168 = vector.load %arg6[%c1_106, %c0_107, %c0_108] : memref<4x32x8xbf16, #tpu.memory_space<vmem>>, vector<1x32x8xbf16>
      %169 = vector.shape_cast %168 : vector<1x32x8xbf16> to vector<32x8xbf16>
      %cst_109 = arith.constant dense<0.000000e+00> : vector<16x8xf32>
      %170 = tpu.matmul %153, %169, %cst_109 {dimension_numbers = #tpu.dot_dimension_numbers<[1], [0], [0], [1], [0, 0, 1, 1], [], []>} : vector<16x32xbf16>, vector<32x8xbf16>, vector<16x8xf32> -> vector<16x8xf32>
      %171 = arith.truncf %170 : vector<16x8xf32> to vector<16x8xbf16>
      %c1_110 = arith.constant 1 : index
      %c0_111 = arith.constant 0 : index
      %c0_112 = arith.constant 0 : index
      %172 = vector.load %arg11[%c1_110, %c0_111, %c0_112] : memref<4x16x8xbf16, #tpu.memory_space<vmem>>, vector<1x16x8xbf16>
      %173 = vector.shape_cast %172 : vector<1x16x8xbf16> to vector<16x8xbf16>
      %174 = vector.shape_cast %171 : vector<16x8xbf16> to vector<1x16x8xbf16>
      tpu.vector_store %arg11[%c1_110, %c0_111, %c0_112], %174 {strides = array<i32>} : memref<4x16x8xbf16, #tpu.memory_space<vmem>>, vector<1x16x8xbf16>,
      %c1_113 = arith.constant 1 : index
      %c0_114 = arith.constant 0 : index
      %c0_115 = arith.constant 0 : index
      %175 = vector.load %arg7[%c1_113, %c0_114, %c0_115] : memref<4x32x8xbf16, #tpu.memory_space<vmem>>, vector<1x32x8xbf16>
      %176 = vector.shape_cast %175 : vector<1x32x8xbf16> to vector<32x8xbf16>
      %cst_116 = arith.constant dense<0.000000e+00> : vector<16x8xf32>
      %177 = tpu.matmul %153, %176, %cst_116 {dimension_numbers = #tpu.dot_dimension_numbers<[1], [0], [0], [1], [0, 0, 1, 1], [], []>} : vector<16x32xbf16>, vector<32x8xbf16>, vector<16x8xf32> -> vector<16x8xf32>
      %178 = arith.truncf %177 : vector<16x8xf32> to vector<16x8xbf16>
      %c1_117 = arith.constant 1 : index
      %c0_118 = arith.constant 0 : index
      %c0_119 = arith.constant 0 : index
      %179 = vector.load %arg12[%c1_117, %c0_118, %c0_119] : memref<4x16x8xbf16, #tpu.memory_space<vmem>>, vector<1x16x8xbf16>
      %180 = vector.shape_cast %179 : vector<1x16x8xbf16> to vector<16x8xbf16>
      %181 = vector.shape_cast %178 : vector<16x8xbf16> to vector<1x16x8xbf16>
      tpu.vector_store %arg12[%c1_117, %c0_118, %c0_119], %181 {strides = array<i32>} : memref<4x16x8xbf16, #tpu.memory_space<vmem>>, vector<1x16x8xbf16>,
      %c2_120 = arith.constant 2 : index
      %c0_121 = arith.constant 0 : index
      %c0_122 = arith.constant 0 : index
      %182 = vector.load %arg6[%c2_120, %c0_121, %c0_122] : memref<4x32x8xbf16, #tpu.memory_space<vmem>>, vector<1x32x8xbf16>
      %183 = vector.shape_cast %182 : vector<1x32x8xbf16> to vector<32x8xbf16>
      %cst_123 = arith.constant dense<0.000000e+00> : vector<16x8xf32>
      %184 = tpu.matmul %153, %183, %cst_123 {dimension_numbers = #tpu.dot_dimension_numbers<[1], [0], [0], [1], [0, 0, 1, 1], [], []>} : vector<16x32xbf16>, vector<32x8xbf16>, vector<16x8xf32> -> vector<16x8xf32>
      %185 = arith.truncf %184 : vector<16x8xf32> to vector<16x8xbf16>
      %c2_124 = arith.constant 2 : index
      %c0_125 = arith.constant 0 : index
      %c0_126 = arith.constant 0 : index
      %186 = vector.load %arg11[%c2_124, %c0_125, %c0_126] : memref<4x16x8xbf16, #tpu.memory_space<vmem>>, vector<1x16x8xbf16>
      %187 = vector.shape_cast %186 : vector<1x16x8xbf16> to vector<16x8xbf16>
      %188 = vector.shape_cast %185 : vector<16x8xbf16> to vector<1x16x8xbf16>
      tpu.vector_store %arg11[%c2_124, %c0_125, %c0_126], %188 {strides = array<i32>} : memref<4x16x8xbf16, #tpu.memory_space<vmem>>, vector<1x16x8xbf16>,
      %c2_127 = arith.constant 2 : index
      %c0_128 = arith.constant 0 : index
      %c0_129 = arith.constant 0 : index
      %189 = vector.load %arg7[%c2_127, %c0_128, %c0_129] : memref<4x32x8xbf16, #tpu.memory_space<vmem>>, vector<1x32x8xbf16>
      %190 = vector.shape_cast %189 : vector<1x32x8xbf16> to vector<32x8xbf16>
      %cst_130 = arith.constant dense<0.000000e+00> : vector<16x8xf32>
      %191 = tpu.matmul %153, %190, %cst_130 {dimension_numbers = #tpu.dot_dimension_numbers<[1], [0], [0], [1], [0, 0, 1, 1], [], []>} : vector<16x32xbf16>, vector<32x8xbf16>, vector<16x8xf32> -> vector<16x8xf32>
      %192 = arith.truncf %191 : vector<16x8xf32> to vector<16x8xbf16>
      %c2_131 = arith.constant 2 : index
      %c0_132 = arith.constant 0 : index
      %c0_133 = arith.constant 0 : index
      %193 = vector.load %arg12[%c2_131, %c0_132, %c0_133] : memref<4x16x8xbf16, #tpu.memory_space<vmem>>, vector<1x16x8xbf16>
      %194 = vector.shape_cast %193 : vector<1x16x8xbf16> to vector<16x8xbf16>
      %195 = vector.shape_cast %192 : vector<16x8xbf16> to vector<1x16x8xbf16>
      tpu.vector_store %arg12[%c2_131, %c0_132, %c0_133], %195 {strides = array<i32>} : memref<4x16x8xbf16, #tpu.memory_space<vmem>>, vector<1x16x8xbf16>,
      %c3_134 = arith.constant 3 : index
      %c0_135 = arith.constant 0 : index
      %c0_136 = arith.constant 0 : index
      %196 = vector.load %arg6[%c3_134, %c0_135, %c0_136] : memref<4x32x8xbf16, #tpu.memory_space<vmem>>, vector<1x32x8xbf16>
      %197 = vector.shape_cast %196 : vector<1x32x8xbf16> to vector<32x8xbf16>
      %cst_137 = arith.constant dense<0.000000e+00> : vector<16x8xf32>
      %198 = tpu.matmul %153, %197, %cst_137 {dimension_numbers = #tpu.dot_dimension_numbers<[1], [0], [0], [1], [0, 0, 1, 1], [], []>} : vector<16x32xbf16>, vector<32x8xbf16>, vector<16x8xf32> -> vector<16x8xf32>
      %199 = arith.truncf %198 : vector<16x8xf32> to vector<16x8xbf16>
      %c3_138 = arith.constant 3 : index
      %c0_139 = arith.constant 0 : index
      %c0_140 = arith.constant 0 : index
      %200 = vector.load %arg11[%c3_138, %c0_139, %c0_140] : memref<4x16x8xbf16, #tpu.memory_space<vmem>>, vector<1x16x8xbf16>
      %201 = vector.shape_cast %200 : vector<1x16x8xbf16> to vector<16x8xbf16>
      %202 = vector.shape_cast %199 : vector<16x8xbf16> to vector<1x16x8xbf16>
      tpu.vector_store %arg11[%c3_138, %c0_139, %c0_140], %202 {strides = array<i32>} : memref<4x16x8xbf16, #tpu.memory_space<vmem>>, vector<1x16x8xbf16>,
      %c3_141 = arith.constant 3 : index
      %c0_142 = arith.constant 0 : index
      %c0_143 = arith.constant 0 : index
      %203 = vector.load %arg7[%c3_141, %c0_142, %c0_143] : memref<4x32x8xbf16, #tpu.memory_space<vmem>>, vector<1x32x8xbf16>
      %204 = vector.shape_cast %203 : vector<1x32x8xbf16> to vector<32x8xbf16>
      %cst_144 = arith.constant dense<0.000000e+00> : vector<16x8xf32>
      %205 = tpu.matmul %153, %204, %cst_144 {dimension_numbers = #tpu.dot_dimension_numbers<[1], [0], [0], [1], [0, 0, 1, 1], [], []>} : vector<16x32xbf16>, vector<32x8xbf16>, vector<16x8xf32> -> vector<16x8xf32>
      %206 = arith.truncf %205 : vector<16x8xf32> to vector<16x8xbf16>
      %c3_145 = arith.constant 3 : index
      %c0_146 = arith.constant 0 : index
      %c0_147 = arith.constant 0 : index
      %207 = vector.load %arg12[%c3_145, %c0_146, %c0_147] : memref<4x16x8xbf16, #tpu.memory_space<vmem>>, vector<1x16x8xbf16>
      %208 = vector.shape_cast %207 : vector<1x16x8xbf16> to vector<16x8xbf16>
      %209 = vector.shape_cast %206 : vector<16x8xbf16> to vector<1x16x8xbf16>
      tpu.vector_store %arg12[%c3_145, %c0_146, %c0_147], %209 {strides = array<i32>} : memref<4x16x8xbf16, #tpu.memory_space<vmem>>, vector<1x16x8xbf16>,
    } else {
    }
    %c0 = arith.constant 0 : index
    %c0_1 = arith.constant 0 : index
    %3 = vector.load %arg2[%c0, %c0_1] : memref<8x32xf32, #tpu.memory_space<vmem>>, vector<8x32xf32>
    %cst = arith.constant dense<0.000000e+00> : vector<8xf32>
    %4 = vector.multi_reduction <add>, %3, %cst [1] : vector<8x32xf32> to vector<8xf32>
    %5 = vector.shape_cast %4 : vector<8xf32> to vector<8x1xf32>
    %cst_2 = arith.constant 3.200000e+01 : f32
    %6 = vector.broadcast %cst_2 : f32 to vector<8x1xf32>
    %7 = arith.divf %5, %6 : vector<8x1xf32>
    %8 = vector.broadcast %7 : vector<8x1xf32> to vector<8x32xf32>
    %9 = arith.subf %3, %8 : vector<8x32xf32>
    %10 = arith.mulf %9, %9 : vector<8x32xf32>
    %cst_3 = arith.constant dense<0.000000e+00> : vector<8xf32>
    %11 = vector.multi_reduction <add>, %10, %cst_3 [1] : vector<8x32xf32> to vector<8xf32>
    %12 = vector.shape_cast %11 : vector<8xf32> to vector<8x1xf32>
    %cst_4 = arith.constant 3.200000e+01 : f32
    %13 = vector.broadcast %cst_4 : f32 to vector<8x1xf32>
    %14 = arith.divf %12, %13 : vector<8x1xf32>
    %cst_5 = arith.constant 9.99999974E-6 : f32
    %15 = vector.broadcast %cst_5 : f32 to vector<8x1xf32>
    %16 = arith.addf %14, %15 : vector<8x1xf32>
    %17 = math.rsqrt %16 : vector<8x1xf32>
    %18 = vector.broadcast %17 : vector<8x1xf32> to vector<8x32xf32>
    %19 = arith.mulf %9, %18 : vector<8x32xf32>
    %20 = arith.truncf %19 : vector<8x32xf32> to vector<8x32xbf16>
    %c0_6 = arith.constant 0 : index
    %c0_7 = arith.constant 0 : index
    %c0_8 = arith.constant 0 : index
    %21 = vector.load %arg4[%c0_6, %c0_7, %c0_8] : memref<4x32x8xbf16, #tpu.memory_space<vmem>>, vector<1x32x8xbf16>
    %22 = vector.shape_cast %21 : vector<1x32x8xbf16> to vector<32x8xbf16>
    %cst_9 = arith.constant dense<0.000000e+00> : vector<8x8xf32>
    %23 = tpu.matmul %20, %22, %cst_9 {dimension_numbers = #tpu.dot_dimension_numbers<[1], [0], [0], [1], [0, 0, 1, 1], [], []>} : vector<8x32xbf16>, vector<32x8xbf16>, vector<8x8xf32> -> vector<8x8xf32>
    %c0_10 = arith.constant 0 : index
    %c0_11 = arith.constant 0 : index
    %c0_12 = arith.constant 0 : index
    %24 = vector.load %arg5[%c0_10, %c0_11, %c0_12] : memref<4x1x8xf32, #tpu.memory_space<vmem>>, vector<1x1x8xf32>
    %25 = vector.shape_cast %24 : vector<1x1x8xf32> to vector<1x8xf32>
    %26 = vector.broadcast %25 : vector<1x8xf32> to vector<8x8xf32>
    %27 = arith.addf %23, %26 : vector<8x8xf32>
    %28 = arith.truncf %27 : vector<8x8xf32> to vector<8x8xbf16>
    %c0_13 = arith.constant 0 : index
    %c0_14 = arith.constant 0 : index
    %c0_15 = arith.constant 0 : index
    %29 = vector.load %arg11[%c0_13, %c0_14, %c0_15] : memref<4x16x8xbf16, #tpu.memory_space<vmem>>, vector<1x16x8xbf16>
    %30 = vector.shape_cast %29 : vector<1x16x8xbf16> to vector<16x8xbf16>
    %cst_16 = arith.constant dense<0.000000e+00> : vector<8x16xf32>
    %31 = tpu.matmul %28, %30, %cst_16 {dimension_numbers = #tpu.dot_dimension_numbers<[1], [1], [0], [0], [0, 0, 1, 0], [], []>} : vector<8x8xbf16>, vector<16x8xbf16>, vector<8x16xf32> -> vector<8x16xf32>
    %cst_17 = arith.constant dense<0xFF800000> : vector<8xf32>
    %32 = vector.multi_reduction <maximumf>, %31, %cst_17 [1] : vector<8x16xf32> to vector<8xf32>
    %33 = vector.shape_cast %32 : vector<8xf32> to vector<8x1xf32>
    %34 = vector.broadcast %33 : vector<8x1xf32> to vector<8x16xf32>
    %35 = arith.subf %31, %34 : vector<8x16xf32>
    %36 = math.exp %35 : vector<8x16xf32>
    %cst_18 = arith.constant dense<0.000000e+00> : vector<8xf32>
    %37 = vector.multi_reduction <add>, %36, %cst_18 [1] : vector<8x16xf32> to vector<8xf32>
    %38 = vector.shape_cast %37 : vector<8xf32> to vector<8x1xf32>
    %39 = arith.truncf %36 : vector<8x16xf32> to vector<8x16xbf16>
    %c0_19 = arith.constant 0 : index
    %c0_20 = arith.constant 0 : index
    %c0_21 = arith.constant 0 : index
    %40 = vector.load %arg12[%c0_19, %c0_20, %c0_21] : memref<4x16x8xbf16, #tpu.memory_space<vmem>>, vector<1x16x8xbf16>
    %41 = vector.shape_cast %40 : vector<1x16x8xbf16> to vector<16x8xbf16>
    %cst_22 = arith.constant dense<0.000000e+00> : vector<8x8xf32>
    %42 = tpu.matmul %39, %41, %cst_22 {dimension_numbers = #tpu.dot_dimension_numbers<[1], [0], [0], [1], [0, 0, 1, 1], [], []>} : vector<8x16xbf16>, vector<16x8xbf16>, vector<8x8xf32> -> vector<8x8xf32>
    %43 = tpu.reciprocal %38 {approx = true} : vector<8x1xf32> -> vector<8x1xf32>
    %44 = vector.broadcast %43 : vector<8x1xf32> to vector<8x8xf32>
    %45 = arith.mulf %42, %44 : vector<8x8xf32>
    %46 = arith.truncf %45 : vector<8x8xf32> to vector<8x8xbf16>
    %c0_23 = arith.constant 0 : index
    %c0_24 = arith.constant 0 : index
    %47 = vector.load %arg13[%c0_23, %c0_24] : memref<8x32xbf16, #tpu.memory_space<vmem>>, vector<8x8xbf16>
    tpu.vector_store %arg13[%c0_23, %c0_24], %46 {strides = array<i32>} : memref<8x32xbf16, #tpu.memory_space<vmem>>, vector<8x8xbf16>,
    %c1 = arith.constant 1 : index
    %c0_25 = arith.constant 0 : index
    %c0_26 = arith.constant 0 : index
    %48 = vector.load %arg4[%c1, %c0_25, %c0_26] : memref<4x32x8xbf16, #tpu.memory_space<vmem>>, vector<1x32x8xbf16>
    %49 = vector.shape_cast %48 : vector<1x32x8xbf16> to vector<32x8xbf16>
    %cst_27 = arith.constant dense<0.000000e+00> : vector<8x8xf32>
    %50 = tpu.matmul %20, %49, %cst_27 {dimension_numbers = #tpu.dot_dimension_numbers<[1], [0], [0], [1], [0, 0, 1, 1], [], []>} : vector<8x32xbf16>, vector<32x8xbf16>, vector<8x8xf32> -> vector<8x8xf32>
    %c1_28 = arith.constant 1 : index
    %c0_29 = arith.constant 0 : index
    %c0_30 = arith.constant 0 : index
    %51 = vector.load %arg5[%c1_28, %c0_29, %c0_30] : memref<4x1x8xf32, #tpu.memory_space<vmem>>, vector<1x1x8xf32>
    %52 = vector.shape_cast %51 : vector<1x1x8xf32> to vector<1x8xf32>
    %53 = vector.broadcast %52 : vector<1x8xf32> to vector<8x8xf32>
    %54 = arith.addf %50, %53 : vector<8x8xf32>
    %55 = arith.truncf %54 : vector<8x8xf32> to vector<8x8xbf16>
    %c1_31 = arith.constant 1 : index
    %c0_32 = arith.constant 0 : index
    %c0_33 = arith.constant 0 : index
    %56 = vector.load %arg11[%c1_31, %c0_32, %c0_33] : memref<4x16x8xbf16, #tpu.memory_space<vmem>>, vector<1x16x8xbf16>
    %57 = vector.shape_cast %56 : vector<1x16x8xbf16> to vector<16x8xbf16>
    %cst_34 = arith.constant dense<0.000000e+00> : vector<8x16xf32>
    %58 = tpu.matmul %55, %57, %cst_34 {dimension_numbers = #tpu.dot_dimension_numbers<[1], [1], [0], [0], [0, 0, 1, 0], [], []>} : vector<8x8xbf16>, vector<16x8xbf16>, vector<8x16xf32> -> vector<8x16xf32>
    %cst_35 = arith.constant dense<0xFF800000> : vector<8xf32>
    %59 = vector.multi_reduction <maximumf>, %58, %cst_35 [1] : vector<8x16xf32> to vector<8xf32>
    %60 = vector.shape_cast %59 : vector<8xf32> to vector<8x1xf32>
    %61 = vector.broadcast %60 : vector<8x1xf32> to vector<8x16xf32>
    %62 = arith.subf %58, %61 : vector<8x16xf32>
    %63 = math.exp %62 : vector<8x16xf32>
    %cst_36 = arith.constant dense<0.000000e+00> : vector<8xf32>
    %64 = vector.multi_reduction <add>, %63, %cst_36 [1] : vector<8x16xf32> to vector<8xf32>
    %65 = vector.shape_cast %64 : vector<8xf32> to vector<8x1xf32>
    %66 = arith.truncf %63 : vector<8x16xf32> to vector<8x16xbf16>
    %c1_37 = arith.constant 1 : index
    %c0_38 = arith.constant 0 : index
    %c0_39 = arith.constant 0 : index
    %67 = vector.load %arg12[%c1_37, %c0_38, %c0_39] : memref<4x16x8xbf16, #tpu.memory_space<vmem>>, vector<1x16x8xbf16>
    %68 = vector.shape_cast %67 : vector<1x16x8xbf16> to vector<16x8xbf16>
    %cst_40 = arith.constant dense<0.000000e+00> : vector<8x8xf32>
    %69 = tpu.matmul %66, %68, %cst_40 {dimension_numbers = #tpu.dot_dimension_numbers<[1], [0], [0], [1], [0, 0, 1, 1], [], []>} : vector<8x16xbf16>, vector<16x8xbf16>, vector<8x8xf32> -> vector<8x8xf32>
    %70 = tpu.reciprocal %65 {approx = true} : vector<8x1xf32> -> vector<8x1xf32>
    %71 = vector.broadcast %70 : vector<8x1xf32> to vector<8x8xf32>
    %72 = arith.mulf %69, %71 : vector<8x8xf32>
    %73 = arith.truncf %72 : vector<8x8xf32> to vector<8x8xbf16>
    %c0_41 = arith.constant 0 : index
    %c8 = arith.constant 8 : index
    %74 = vector.load %arg13[%c0_41, %c8] : memref<8x32xbf16, #tpu.memory_space<vmem>>, vector<8x8xbf16>
    tpu.vector_store %arg13[%c0_41, %c8], %73 {strides = array<i32>} : memref<8x32xbf16, #tpu.memory_space<vmem>>, vector<8x8xbf16>,
    %c2 = arith.constant 2 : index
    %c0_42 = arith.constant 0 : index
    %c0_43 = arith.constant 0 : index
    %75 = vector.load %arg4[%c2, %c0_42, %c0_43] : memref<4x32x8xbf16, #tpu.memory_space<vmem>>, vector<1x32x8xbf16>
    %76 = vector.shape_cast %75 : vector<1x32x8xbf16> to vector<32x8xbf16>
    %cst_44 = arith.constant dense<0.000000e+00> : vector<8x8xf32>
    %77 = tpu.matmul %20, %76, %cst_44 {dimension_numbers = #tpu.dot_dimension_numbers<[1], [0], [0], [1], [0, 0, 1, 1], [], []>} : vector<8x32xbf16>, vector<32x8xbf16>, vector<8x8xf32> -> vector<8x8xf32>
    %c2_45 = arith.constant 2 : index
    %c0_46 = arith.constant 0 : index
    %c0_47 = arith.constant 0 : index
    %78 = vector.load %arg5[%c2_45, %c0_46, %c0_47] : memref<4x1x8xf32, #tpu.memory_space<vmem>>, vector<1x1x8xf32>
    %79 = vector.shape_cast %78 : vector<1x1x8xf32> to vector<1x8xf32>
    %80 = vector.broadcast %79 : vector<1x8xf32> to vector<8x8xf32>
    %81 = arith.addf %77, %80 : vector<8x8xf32>
    %82 = arith.truncf %81 : vector<8x8xf32> to vector<8x8xbf16>
    %c2_48 = arith.constant 2 : index
    %c0_49 = arith.constant 0 : index
    %c0_50 = arith.constant 0 : index
    %83 = vector.load %arg11[%c2_48, %c0_49, %c0_50] : memref<4x16x8xbf16, #tpu.memory_space<vmem>>, vector<1x16x8xbf16>
    %84 = vector.shape_cast %83 : vector<1x16x8xbf16> to vector<16x8xbf16>
    %cst_51 = arith.constant dense<0.000000e+00> : vector<8x16xf32>
    %85 = tpu.matmul %82, %84, %cst_51 {dimension_numbers = #tpu.dot_dimension_numbers<[1], [1], [0], [0], [0, 0, 1, 0], [], []>} : vector<8x8xbf16>, vector<16x8xbf16>, vector<8x16xf32> -> vector<8x16xf32>
    %cst_52 = arith.constant dense<0xFF800000> : vector<8xf32>
    %86 = vector.multi_reduction <maximumf>, %85, %cst_52 [1] : vector<8x16xf32> to vector<8xf32>
    %87 = vector.shape_cast %86 : vector<8xf32> to vector<8x1xf32>
    %88 = vector.broadcast %87 : vector<8x1xf32> to vector<8x16xf32>
    %89 = arith.subf %85, %88 : vector<8x16xf32>
    %90 = math.exp %89 : vector<8x16xf32>
    %cst_53 = arith.constant dense<0.000000e+00> : vector<8xf32>
    %91 = vector.multi_reduction <add>, %90, %cst_53 [1] : vector<8x16xf32> to vector<8xf32>
    %92 = vector.shape_cast %91 : vector<8xf32> to vector<8x1xf32>
    %93 = arith.truncf %90 : vector<8x16xf32> to vector<8x16xbf16>
    %c2_54 = arith.constant 2 : index
    %c0_55 = arith.constant 0 : index
    %c0_56 = arith.constant 0 : index
    %94 = vector.load %arg12[%c2_54, %c0_55, %c0_56] : memref<4x16x8xbf16, #tpu.memory_space<vmem>>, vector<1x16x8xbf16>
    %95 = vector.shape_cast %94 : vector<1x16x8xbf16> to vector<16x8xbf16>
    %cst_57 = arith.constant dense<0.000000e+00> : vector<8x8xf32>
    %96 = tpu.matmul %93, %95, %cst_57 {dimension_numbers = #tpu.dot_dimension_numbers<[1], [0], [0], [1], [0, 0, 1, 1], [], []>} : vector<8x16xbf16>, vector<16x8xbf16>, vector<8x8xf32> -> vector<8x8xf32>
    %97 = tpu.reciprocal %92 {approx = true} : vector<8x1xf32> -> vector<8x1xf32>
    %98 = vector.broadcast %97 : vector<8x1xf32> to vector<8x8xf32>
    %99 = arith.mulf %96, %98 : vector<8x8xf32>
    %100 = arith.truncf %99 : vector<8x8xf32> to vector<8x8xbf16>
    %c0_58 = arith.constant 0 : index
    %c16 = arith.constant 16 : index
    %101 = vector.load %arg13[%c0_58, %c16] : memref<8x32xbf16, #tpu.memory_space<vmem>>, vector<8x8xbf16>
    tpu.vector_store %arg13[%c0_58, %c16], %100 {strides = array<i32>} : memref<8x32xbf16, #tpu.memory_space<vmem>>, vector<8x8xbf16>,
    %c3 = arith.constant 3 : index
    %c0_59 = arith.constant 0 : index
    %c0_60 = arith.constant 0 : index
    %102 = vector.load %arg4[%c3, %c0_59, %c0_60] : memref<4x32x8xbf16, #tpu.memory_space<vmem>>, vector<1x32x8xbf16>
    %103 = vector.shape_cast %102 : vector<1x32x8xbf16> to vector<32x8xbf16>
    %cst_61 = arith.constant dense<0.000000e+00> : vector<8x8xf32>
    %104 = tpu.matmul %20, %103, %cst_61 {dimension_numbers = #tpu.dot_dimension_numbers<[1], [0], [0], [1], [0, 0, 1, 1], [], []>} : vector<8x32xbf16>, vector<32x8xbf16>, vector<8x8xf32> -> vector<8x8xf32>
    %c3_62 = arith.constant 3 : index
    %c0_63 = arith.constant 0 : index
    %c0_64 = arith.constant 0 : index
    %105 = vector.load %arg5[%c3_62, %c0_63, %c0_64] : memref<4x1x8xf32, #tpu.memory_space<vmem>>, vector<1x1x8xf32>
    %106 = vector.shape_cast %105 : vector<1x1x8xf32> to vector<1x8xf32>
    %107 = vector.broadcast %106 : vector<1x8xf32> to vector<8x8xf32>
    %108 = arith.addf %104, %107 : vector<8x8xf32>
    %109 = arith.truncf %108 : vector<8x8xf32> to vector<8x8xbf16>
    %c3_65 = arith.constant 3 : index
    %c0_66 = arith.constant 0 : index
    %c0_67 = arith.constant 0 : index
    %110 = vector.load %arg11[%c3_65, %c0_66, %c0_67] : memref<4x16x8xbf16, #tpu.memory_space<vmem>>, vector<1x16x8xbf16>
    %111 = vector.shape_cast %110 : vector<1x16x8xbf16> to vector<16x8xbf16>
    %cst_68 = arith.constant dense<0.000000e+00> : vector<8x16xf32>
    %112 = tpu.matmul %109, %111, %cst_68 {dimension_numbers = #tpu.dot_dimension_numbers<[1], [1], [0], [0], [0, 0, 1, 0], [], []>} : vector<8x8xbf16>, vector<16x8xbf16>, vector<8x16xf32> -> vector<8x16xf32>
    %cst_69 = arith.constant dense<0xFF800000> : vector<8xf32>
    %113 = vector.multi_reduction <maximumf>, %112, %cst_69 [1] : vector<8x16xf32> to vector<8xf32>
    %114 = vector.shape_cast %113 : vector<8xf32> to vector<8x1xf32>
    %115 = vector.broadcast %114 : vector<8x1xf32> to vector<8x16xf32>
    %116 = arith.subf %112, %115 : vector<8x16xf32>
    %117 = math.exp %116 : vector<8x16xf32>
    %cst_70 = arith.constant dense<0.000000e+00> : vector<8xf32>
    %118 = vector.multi_reduction <add>, %117, %cst_70 [1] : vector<8x16xf32> to vector<8xf32>
    %119 = vector.shape_cast %118 : vector<8xf32> to vector<8x1xf32>
    %120 = arith.truncf %117 : vector<8x16xf32> to vector<8x16xbf16>
    %c3_71 = arith.constant 3 : index
    %c0_72 = arith.constant 0 : index
    %c0_73 = arith.constant 0 : index
    %121 = vector.load %arg12[%c3_71, %c0_72, %c0_73] : memref<4x16x8xbf16, #tpu.memory_space<vmem>>, vector<1x16x8xbf16>
    %122 = vector.shape_cast %121 : vector<1x16x8xbf16> to vector<16x8xbf16>
    %cst_74 = arith.constant dense<0.000000e+00> : vector<8x8xf32>
    %123 = tpu.matmul %120, %122, %cst_74 {dimension_numbers = #tpu.dot_dimension_numbers<[1], [0], [0], [1], [0, 0, 1, 1], [], []>} : vector<8x16xbf16>, vector<16x8xbf16>, vector<8x8xf32> -> vector<8x8xf32>
    %124 = tpu.reciprocal %119 {approx = true} : vector<8x1xf32> -> vector<8x1xf32>
    %125 = vector.broadcast %124 : vector<8x1xf32> to vector<8x8xf32>
    %126 = arith.mulf %123, %125 : vector<8x8xf32>
    %127 = arith.truncf %126 : vector<8x8xf32> to vector<8x8xbf16>
    %c0_75 = arith.constant 0 : index
    %c24 = arith.constant 24 : index
    %128 = vector.load %arg13[%c0_75, %c24] : memref<8x32xbf16, #tpu.memory_space<vmem>>, vector<8x8xbf16>
    tpu.vector_store %arg13[%c0_75, %c24], %127 {strides = array<i32>} : memref<8x32xbf16, #tpu.memory_space<vmem>>, vector<8x8xbf16>,
    %c0_76 = arith.constant 0 : index
    %c0_77 = arith.constant 0 : index
    %129 = vector.load %arg13[%c0_76, %c0_77] : memref<8x32xbf16, #tpu.memory_space<vmem>>, vector<8x32xbf16>
    %c0_78 = arith.constant 0 : index
    %c0_79 = arith.constant 0 : index
    %130 = vector.load %arg8[%c0_78, %c0_79] : memref<32x32xbf16, #tpu.memory_space<vmem>>, vector<32x32xbf16>
    %cst_80 = arith.constant dense<0.000000e+00> : vector<8x32xf32>
    %131 = tpu.matmul %129, %130, %cst_80 {dimension_numbers = #tpu.dot_dimension_numbers<[1], [0], [0], [1], [0, 0, 1, 1], [], []>} : vector<8x32xbf16>, vector<32x32xbf16>, vector<8x32xf32> -> vector<8x32xf32>
    %c0_81 = arith.constant 0 : index
    %c0_82 = arith.constant 0 : index
    %132 = vector.load %arg9[%c0_81, %c0_82] : memref<1x32xf32, #tpu.memory_space<vmem>>, vector<1x32xf32>
    %133 = vector.broadcast %132 : vector<1x32xf32> to vector<8x32xf32>
    %134 = arith.addf %131, %133 : vector<8x32xf32>
    %c0_83 = arith.constant 0 : index
    %c0_84 = arith.constant 0 : index
    %135 = vector.load %arg10[%c0_83, %c0_84] : memref<8x32xf32, #tpu.memory_space<vmem>>, vector<8x32xf32>
    tpu.vector_store %arg10[%c0_83, %c0_84], %134 {strides = array<i32>} : memref<8x32xf32, #tpu.memory_space<vmem>>, vector<8x32xf32>,
    return
  }
  func.func @transform_0(%arg0: i32, %arg1: i32) -> (i32, i32) {
    %c2_i32 = arith.constant 2 : i32
    %0 = arith.muli %arg0, %c2_i32 : i32
    %1 = arith.addi %0, %arg1 : i32
    %c0_i32 = arith.constant 0 : i32
    %c0_i32_0 = arith.constant 0 : i32
    return %1, %c0_i32 : i32, i32
  }
  func.func @transform_1(%arg0: i32, %arg1: i32) -> (i32, i32) {
    %c0_i32 = arith.constant 0 : i32
    %c0_i32_0 = arith.constant 0 : i32
    return %arg0, %c0_i32 : i32, i32
  }
  func.func @transform_2(%arg0: i32, %arg1: i32) -> (i32, i32, i32) {
    %c0_i32 = arith.constant 0 : i32
    %c0_i32_0 = arith.constant 0 : i32
    %c0_i32_1 = arith.constant 0 : i32
    %c0_i32_2 = arith.constant 0 : i32
    return %c0_i32, %c0_i32_0, %c0_i32_1 : i32, i32, i32
  }
  func.func @transform_3(%arg0: i32, %arg1: i32) -> (i32, i32, i32) {
    %c0_i32 = arith.constant 0 : i32
    %c0_i32_0 = arith.constant 0 : i32
    %c0_i32_1 = arith.constant 0 : i32
    %c0_i32_2 = arith.constant 0 : i32
    return %c0_i32, %c0_i32_0, %c0_i32_1 : i32, i32, i32
  }
  func.func @transform_4(%arg0: i32, %arg1: i32) -> (i32, i32, i32) {
    %c0_i32 = arith.constant 0 : i32
    %c0_i32_0 = arith.constant 0 : i32
    %c0_i32_1 = arith.constant 0 : i32
    %c0_i32_2 = arith.constant 0 : i32
    return %c0_i32, %c0_i32_0, %c0_i32_1 : i32, i32, i32
  }
  func.func @transform_5(%arg0: i32, %arg1: i32) -> (i32, i32, i32) {
    %c0_i32 = arith.constant 0 : i32
    %c0_i32_0 = arith.constant 0 : i32
    %c0_i32_1 = arith.constant 0 : i32
    %c0_i32_2 = arith.constant 0 : i32
    return %c0_i32, %c0_i32_0, %c0_i32_1 : i32, i32, i32
  }
  func.func @transform_6(%arg0: i32, %arg1: i32) -> (i32, i32) {
    %c0_i32 = arith.constant 0 : i32
    %c0_i32_0 = arith.constant 0 : i32
    %c0_i32_1 = arith.constant 0 : i32
    return %c0_i32, %c0_i32_0 : i32, i32
  }
  func.func @transform_7(%arg0: i32, %arg1: i32) -> (i32, i32) {
    %c0_i32 = arith.constant 0 : i32
    %c0_i32_0 = arith.constant 0 : i32
    %c0_i32_1 = arith.constant 0 : i32
    return %c0_i32, %c0_i32_0 : i32, i32
  }
  func.func @transform_8(%arg0: i32, %arg1: i32) -> (i32, i32) {
    %c2_i32 = arith.constant 2 : i32
    %0 = arith.muli %arg0, %c2_i32 : i32
    %1 = arith.addi %0, %arg1 : i32
    %c0_i32 = arith.constant 0 : i32
    %c0_i32_0 = arith.constant 0 : i32
    return %1, %c0_i32 : i32, i32
  }
}

</mosaic_0001>

<llo_original>
// kernel: tpu_custom_call.1
$region0: #{tpu_custom_call.1}
  #allocation0 [shape = 'u32[]', space=smem, size = 0x4, offset = 0x4, fixed_abs, tag = 'smem constant byte address 0x4 - core index']
  #allocation1 [shape = 'u32[144,128]{1,0:T(1,128)}', space=vmem, size = 0x12000, scoped, tag = 'internal scratch']
  #allocation2 [shape = 'bf16[4,16,8]{2,1,0:T(16,128)(2,1)}', space=vmem, size = 0x4000, scoped, tag = 'scratch operand']
  #allocation3 [shape = 'bf16[4,16,8]{2,1,0:T(16,128)(2,1)}', space=vmem, size = 0x4000, scoped, tag = 'scratch operand']
  #allocation4 [shape = 'bf16[8,32]{1,0:T(8,128)(2,1)}', space=vmem, size = 0x800, scoped, tag = 'scratch operand']
  %s0 = inlined_call_operand.vmem [shape: f32[32,32], index: 0, kind: input, shape index: {}]
  %s1 = inlined_call_operand.vmem [shape: f32[32,32], index: 1, kind: input, shape index: {}]
  %s2 = inlined_call_operand.vmem [shape: bf16[4,32,8], index: 2, kind: input, shape index: {}]
  %s3 = inlined_call_operand.vmem [shape: f32[4,1,8], index: 3, kind: input, shape index: {}]
  %s4 = inlined_call_operand.vmem [shape: bf16[4,32,8], index: 4, kind: input, shape index: {}]
  %s5 = inlined_call_operand.vmem [shape: bf16[4,32,8], index: 5, kind: input, shape index: {}]
  %s6 = inlined_call_operand.vmem [shape: bf16[32,32], index: 6, kind: input, shape index: {}]
  %s7 = inlined_call_operand.vmem [shape: f32[1,32], index: 7, kind: input, shape index: {}]
  %s8 = inlined_call_operand.hbm [shape: f32[32,32], index: 8, kind: output, shape index: {}]
  %s9 = sld [smem:[#allocation0]]
  $region69: #{tpu_custom_call.1} parent=0
    _
  %s11 = ssub.s32 1, %s9
  %s12 = scalar_select 0, %s11, %s9
  $region1: #{tpu_custom_call.1} parent=0
    #allocation5 [shape = 'u8[8192]{0}', space=vmem, size = 0x2000, scoped, tag = 'output window, operand 0']
    #allocation6 [shape = 's32[2]{0}', space=sflag, size = 0x8, scoped, tag = 'scoped memory for tpu_custom_call.1']
    %13 = vsyncpa [#allocation6], 0
    %s14 = scalar_lea.sflag [#allocation6], 1
    %15 = vsyncpa %s14, 0
    loop: start=0, step=1, limit=6
    $region2: #{tpu_custom_call.1} parent=1 // loop_pre_header
      _
    $region3: #{tpu_custom_call.1} parent=1 // loop_header
      %s17 = sphi 0, %s21
      %p18 = scmp.ge.s32.totalorder %s17, 6
      %s24 = sphi 0, %s36
      %s25 = sphi 0, %s32
      %s26 = sphi 0, %s24
      %s27 = sphi 0, %s25
      %s28 = sphi 0, %s26
      %s29 = sphi 0, %s27
      %s43 = sphi 0, %s45
      %s46 = sphi 0, %s43
      %s47 = sphi 0, %s46
      %s63 = sphi 0, %s47
      %s69 = sphi 0, %s71
      %s72 = sphi 0, %s69
      %s73 = sphi 0, %s72
      %s89 = sphi 0, %s73
      %s93 = sphi 0, %s93
      %s95 = sphi 0, %s93
      %s96 = sphi 0, %s95
      %s110 = sphi 0, %s96
      %s114 = sphi 0, %s114
      %s116 = sphi 0, %s114
      %s117 = sphi 0, %s116
      %s131 = sphi 0, %s117
      %s135 = sphi 0, %s135
      %s137 = sphi 0, %s135
      %s138 = sphi 0, %s137
      %s152 = sphi 0, %s138
      %s156 = sphi 0, %s156
      %s158 = sphi 0, %s156
      %s159 = sphi 0, %s158
      %s173 = sphi 0, %s159
      %s177 = sphi 0, %s177
      %s179 = sphi 0, %s177
      %s180 = sphi 0, %s179
      %s194 = sphi 0, %s180
      %s198 = sphi 0, %s198
      %s200 = sphi 0, %s198
      %s201 = sphi 0, %s200
      %s215 = sphi 0, %s201
      %s225 = sphi 0, %s227
      %s228 = sphi 0, %s225
      %s229 = sphi 0, %s228
      %s245 = sphi 0, %s229
    $region4: #{tpu_custom_call.1} parent=1 // loop_header_branch
      %20 = sbr.rel (%p18) target = $region8
    $region5: #{tpu_custom_call.1} parent=1 // loop_body
      %s22 = ssub.s32 %s17, 1
      %s23 = ssub.s32 %s17, 2
      %s30 = sadd.s32 1, %s25
      %p31 = scmp.ge.s32.totalorder %s30, 2
      %s32 = scalar_select %p31, 0, %s30
      %s33 = sadd.s32 1, %s24
      %s34 = scalar_select %p31, %s33, %s24
      %p35 = scmp.ge.s32.totalorder %s34, 2
      %s36 = scalar_select %p35, 0, %s34
      %s37 = smul.u32 %s24, 2
      %s38 = sadd.s32 %s37, %s25
      %s39 = smul.u32 %s36, 2
      %s40 = sadd.s32 %s39, %s32
      %s41 = ssub.s32 %s38, %s40
      %p42 = scmp.eq.s32.totalorder %s41, 0
      %s44 = sadd.s32 %s43, 1
      %s45 = scalar_select %p42, %s43, %s44
      %p48 = pneg %p42
      %p49 = scmp.eq.s32.totalorder %s17, 3
      %p50 = por %p48, %p49
      %p51 = scmp.ne.s32.totalorder %s43, %s46
      %p52 = scmp.eq.s32.totalorder %s17, 0
      %p53 = por %p51, %p52
      %p54 = scmp.ne.s32.totalorder %s43, %s46
      %p55 = scmp.eq.s32.totalorder %s22, 3
      %p56 = por %p54, %p55
      %p57 = scmp.ne.s32.totalorder %s46, %s47
      %p58 = scmp.eq.s32.totalorder %s22, 0
      %p59 = por %p57, %p58
      %p60 = scmp.ne.s32.totalorder %s46, %s47
      %p61 = scmp.eq.s32.totalorder %s23, 3
      %p62 = por %p60, %p61
      %p64 = scmp.ne.s32.totalorder %s47, %s63
      %p65 = scmp.eq.s32.totalorder %s23, 0
      %p66 = por %p64, %p65
      %s67 = ssub.s32 %s24, %s36
      %p68 = scmp.eq.s32.totalorder %s67, 0
      %s70 = sadd.s32 %s69, 1
      %s71 = scalar_select %p68, %s69, %s70
      %p74 = pneg %p68
      %p75 = scmp.eq.s32.totalorder %s17, 3
      %p76 = por %p74, %p75
      %p77 = scmp.ne.s32.totalorder %s69, %s72
      %p78 = scmp.eq.s32.totalorder %s17, 0
      %p79 = por %p77, %p78
      %p80 = scmp.ne.s32.totalorder %s69, %s72
      %p81 = scmp.eq.s32.totalorder %s22, 3
      %p82 = por %p80, %p81
      %p83 = scmp.ne.s32.totalorder %s72, %s73
      %p84 = scmp.eq.s32.totalorder %s22, 0
      %p85 = por %p83, %p84
      %p86 = scmp.ne.s32.totalorder %s72, %s73
      %p87 = scmp.eq.s32.totalorder %s23, 3
      %p88 = por %p86, %p87
      %p90 = scmp.ne.s32.totalorder %s73, %s89
      %p91 = scmp.eq.s32.totalorder %s23, 0
      %p92 = por %p90, %p91
      %s94 = sadd.s32 %s93, 1
      %p97 = scmp.eq.s32.totalorder %s17, 3
      %p98 = scmp.ne.s32.totalorder %s93, %s95
      %p99 = scmp.eq.s32.totalorder %s17, 0
      %p100 = por %p98, %p99
      %p101 = scmp.ne.s32.totalorder %s93, %s95
      %p102 = scmp.eq.s32.totalorder %s22, 3
      %p103 = por %p101, %p102
      %p104 = scmp.ne.s32.totalorder %s95, %s96
      %p105 = scmp.eq.s32.totalorder %s22, 0
      %p106 = por %p104, %p105
      %p107 = scmp.ne.s32.totalorder %s95, %s96
      %p108 = scmp.eq.s32.totalorder %s23, 3
      %p109 = por %p107, %p108
      %p111 = scmp.ne.s32.totalorder %s96, %s110
      %p112 = scmp.eq.s32.totalorder %s23, 0
      %p113 = por %p111, %p112
      %s115 = sadd.s32 %s114, 1
      %p118 = scmp.eq.s32.totalorder %s17, 3
      %p119 = scmp.ne.s32.totalorder %s114, %s116
      %p120 = scmp.eq.s32.totalorder %s17, 0
      %p121 = por %p119, %p120
      %p122 = scmp.ne.s32.totalorder %s114, %s116
      %p123 = scmp.eq.s32.totalorder %s22, 3
      %p124 = por %p122, %p123
      %p125 = scmp.ne.s32.totalorder %s116, %s117
      %p126 = scmp.eq.s32.totalorder %s22, 0
      %p127 = por %p125, %p126
      %p128 = scmp.ne.s32.totalorder %s116, %s117
      %p129 = scmp.eq.s32.totalorder %s23, 3
      %p130 = por %p128, %p129
      %p132 = scmp.ne.s32.totalorder %s117, %s131
      %p133 = scmp.eq.s32.totalorder %s23, 0
      %p134 = por %p132, %p133
      %s136 = sadd.s32 %s135, 1
      %p139 = scmp.eq.s32.totalorder %s17, 3
      %p140 = scmp.ne.s32.totalorder %s135, %s137
      %p141 = scmp.eq.s32.totalorder %s17, 0
      %p142 = por %p140, %p141
      %p143 = scmp.ne.s32.totalorder %s135, %s137
      %p144 = scmp.eq.s32.totalorder %s22, 3
      %p145 = por %p143, %p144
      %p146 = scmp.ne.s32.totalorder %s137, %s138
      %p147 = scmp.eq.s32.totalorder %s22, 0
      %p148 = por %p146, %p147
      %p149 = scmp.ne.s32.totalorder %s137, %s138
      %p150 = scmp.eq.s32.totalorder %s23, 3
      %p151 = por %p149, %p150
      %p153 = scmp.ne.s32.totalorder %s138, %s152
      %p154 = scmp.eq.s32.totalorder %s23, 0
      %p155 = por %p153, %p154
      %s157 = sadd.s32 %s156, 1
      %p160 = scmp.eq.s32.totalorder %s17, 3
      %p161 = scmp.ne.s32.totalorder %s156, %s158
      %p162 = scmp.eq.s32.totalorder %s17, 0
      %p163 = por %p161, %p162
      %p164 = scmp.ne.s32.totalorder %s156, %s158
      %p165 = scmp.eq.s32.totalorder %s22, 3
      %p166 = por %p164, %p165
      %p167 = scmp.ne.s32.totalorder %s158, %s159
      %p168 = scmp.eq.s32.totalorder %s22, 0
      %p169 = por %p167, %p168
      %p170 = scmp.ne.s32.totalorder %s158, %s159
      %p171 = scmp.eq.s32.totalorder %s23, 3
      %p172 = por %p170, %p171
      %p174 = scmp.ne.s32.totalorder %s159, %s173
      %p175 = scmp.eq.s32.totalorder %s23, 0
      %p176 = por %p174, %p175
      %s178 = sadd.s32 %s177, 1
      %p181 = scmp.eq.s32.totalorder %s17, 3
      %p182 = scmp.ne.s32.totalorder %s177, %s179
      %p183 = scmp.eq.s32.totalorder %s17, 0
      %p184 = por %p182, %p183
      %p185 = scmp.ne.s32.totalorder %s177, %s179
      %p186 = scmp.eq.s32.totalorder %s22, 3
      %p187 = por %p185, %p186
      %p188 = scmp.ne.s32.totalorder %s179, %s180
      %p189 = scmp.eq.s32.totalorder %s22, 0
      %p190 = por %p188, %p189
      %p191 = scmp.ne.s32.totalorder %s179, %s180
      %p192 = scmp.eq.s32.totalorder %s23, 3
      %p193 = por %p191, %p192
      %p195 = scmp.ne.s32.totalorder %s180, %s194
      %p196 = scmp.eq.s32.totalorder %s23, 0
      %p197 = por %p195, %p196
      %s199 = sadd.s32 %s198, 1
      %p202 = scmp.eq.s32.totalorder %s17, 3
      %p203 = scmp.ne.s32.totalorder %s198, %s200
      %p204 = scmp.eq.s32.totalorder %s17, 0
      %p205 = por %p203, %p204
      %p206 = scmp.ne.s32.totalorder %s198, %s200
      %p207 = scmp.eq.s32.totalorder %s22, 3
      %p208 = por %p206, %p207
      %p209 = scmp.ne.s32.totalorder %s200, %s201
      %p210 = scmp.eq.s32.totalorder %s22, 0
      %p211 = por %p209, %p210
      %p212 = scmp.ne.s32.totalorder %s200, %s201
      %p213 = scmp.eq.s32.totalorder %s23, 3
      %p214 = por %p212, %p213
      %p216 = scmp.ne.s32.totalorder %s201, %s215
      %p217 = scmp.eq.s32.totalorder %s23, 0
      %p218 = por %p216, %p217
      %s219 = smul.u32 %s24, 2
      %s220 = sadd.s32 %s219, %s25
      %s221 = smul.u32 %s36, 2
      %s222 = sadd.s32 %s221, %s32
      %s223 = ssub.s32 %s220, %s222
      %p224 = scmp.eq.s32.totalorder %s223, 0
      %s226 = sadd.s32 %s225, 1
      %s227 = scalar_select %p224, %s225, %s226
      %p230 = pneg %p224
      %p231 = scmp.eq.s32.totalorder %s17, 3
      %p232 = por %p230, %p231
      %p233 = scmp.ne.s32.totalorder %s225, %s228
      %p234 = scmp.eq.s32.totalorder %s17, 0
      %p235 = por %p233, %p234
      %p236 = scmp.ne.s32.totalorder %s225, %s228
      %p237 = scmp.eq.s32.totalorder %s22, 3
      %p238 = por %p236, %p237
      %p239 = scmp.ne.s32.totalorder %s228, %s229
      %p240 = scmp.eq.s32.totalorder %s22, 0
      %p241 = por %p239, %p240
      %p242 = scmp.ne.s32.totalorder %s228, %s229
      %p243 = scmp.eq.s32.totalorder %s23, 3
      %p244 = por %p242, %p243
      %p246 = scmp.ne.s32.totalorder %s229, %s245
      %p247 = scmp.eq.s32.totalorder %s23, 0
      %p248 = por %p246, %p247
      %p249 = scmp.le.s32.totalorder 1, %s17
      %p250 = scmp.lt.s32.totalorder %s17, 5
      %p251 = pnand %p249, %p250
      %p252 = pneg %p251
      // Predicated region
      $region9: #{tpu_custom_call.1} parent=5 // pred_check
        _
      $region10: #{tpu_custom_call.1} parent=5 // pred_check_branch
        %254 = sbr.rel (%p251) target = $region12
      $region11: #{tpu_custom_call.1} parent=5 // pred_region
        %s255 = ssub.s32 %s17, 1
        // Predicated region
        $region13: #{tpu_custom_call.1} parent=11 // pred_check
          %p256 = pneg %p106
        $region14: #{tpu_custom_call.1} parent=11 // pred_check_branch
          %258 = sbr.rel (%p256) target = $region16
        $region15: #{tpu_custom_call.1} parent=11 // pred_region
          _
        $region16: #{tpu_custom_call.1} parent=11 // pred_fallthru
          _
        // Predicated region
        $region17: #{tpu_custom_call.1} parent=11 // pred_check
          %p259 = pneg %p127
        $region18: #{tpu_custom_call.1} parent=11 // pred_check_branch
          %261 = sbr.rel (%p259) target = $region20
        $region19: #{tpu_custom_call.1} parent=11 // pred_region
          _
        $region20: #{tpu_custom_call.1} parent=11 // pred_fallthru
          _
        // Predicated region
        $region21: #{tpu_custom_call.1} parent=11 // pred_check
          %p262 = pneg %p148
        $region22: #{tpu_custom_call.1} parent=11 // pred_check_branch
          %264 = sbr.rel (%p262) target = $region24
        $region23: #{tpu_custom_call.1} parent=11 // pred_region
          _
        $region24: #{tpu_custom_call.1} parent=11 // pred_fallthru
          _
        // Predicated region
        $region25: #{tpu_custom_call.1} parent=11 // pred_check
          %p265 = pneg %p169
        $region26: #{tpu_custom_call.1} parent=11 // pred_check_branch
          %267 = sbr.rel (%p265) target = $region28
        $region27: #{tpu_custom_call.1} parent=11 // pred_region
          _
        $region28: #{tpu_custom_call.1} parent=11 // pred_fallthru
          _
        // Predicated region
        $region29: #{tpu_custom_call.1} parent=11 // pred_check
          %p268 = pneg %p190
        $region30: #{tpu_custom_call.1} parent=11 // pred_check_branch
          %270 = sbr.rel (%p268) target = $region32
        $region31: #{tpu_custom_call.1} parent=11 // pred_region
          _
        $region32: #{tpu_custom_call.1} parent=11 // pred_fallthru
          _
        // Predicated region
        $region33: #{tpu_custom_call.1} parent=11 // pred_check
          %p271 = pneg %p211
        $region34: #{tpu_custom_call.1} parent=11 // pred_check_branch
          %273 = sbr.rel (%p271) target = $region36
        $region35: #{tpu_custom_call.1} parent=11 // pred_region
          _
        $region36: #{tpu_custom_call.1} parent=11 // pred_fallthru
          _
      $region12: #{tpu_custom_call.1} parent=5 // pred_fallthru
        _
      %p274 = scmp.lt.s32.totalorder %s17, 4
      // Predicated region
      $region37: #{tpu_custom_call.1} parent=5 // pred_check
        %p275 = pneg %p274
      $region38: #{tpu_custom_call.1} parent=5 // pred_check_branch
        %277 = sbr.rel (%p275) target = $region40
      $region39: #{tpu_custom_call.1} parent=5 // pred_region
        // Predicated region
        $region41: #{tpu_custom_call.1} parent=39 // pred_check
          %p278 = pneg %p53
        $region42: #{tpu_custom_call.1} parent=39 // pred_check_branch
          %280 = sbr.rel (%p278) target = $region44
        $region43: #{tpu_custom_call.1} parent=39 // pred_region
          %s281 = smul.u32 %s24, 2
          %s282 = sadd.s32 %s281, %s25
          %p283 = scmp.lt.s32.totalorder %s282, 3
          %s284 = scalar_select %p283, %s282, 3
          %s285 = smul.addr %s284, 8
          %s286 = scalar_lea.vmem %s0, %s285
          %s287 = smul.u32 %s24, 2
          %s288 = sadd.s32 %s287, %s25
        $region44: #{tpu_custom_call.1} parent=39 // pred_fallthru
          _
        // Predicated region
        $region45: #{tpu_custom_call.1} parent=39 // pred_check
          %p289 = pneg %p79
        $region46: #{tpu_custom_call.1} parent=39 // pred_check_branch
          %291 = sbr.rel (%p289) target = $region48
        $region47: #{tpu_custom_call.1} parent=39 // pred_region
          %s292 = smul.u32 2, %s24
          %p293 = scmp.lt.s32.totalorder %s292, 3
          %s294 = scalar_select %p293, %s292, 3
          %s295 = smul.addr %s294, 8
          %s296 = scalar_lea.vmem %s1, %s295
          %s297 = smul.u32 2, %s24
        $region48: #{tpu_custom_call.1} parent=39 // pred_fallthru
          _
      $region40: #{tpu_custom_call.1} parent=5 // pred_fallthru
        _
      %p298 = scmp.le.s32.totalorder 1, %s17
      %p299 = scmp.lt.s32.totalorder %s17, 5
      %p300 = pnand %p298, %p299
      %p301 = pneg %p300
      // Predicated region
      $region49: #{tpu_custom_call.1} parent=5 // pred_check
        _
      $region50: #{tpu_custom_call.1} parent=5 // pred_check_branch
        %303 = sbr.rel (%p300) target = $region52
      $region51: #{tpu_custom_call.1} parent=5 // pred_region
        %s304 = ssub.s32 %s17, 1
        %s305 = smul.u32 %s26, 2
        %s306 = sadd.s32 %s305, %s27
        %p307 = scmp.lt.s32.totalorder %s306, 3
        %s308 = scalar_select %p307, %s306, 3
        %s309 = smul.addr %s308, 8
        %s310 = scalar_lea.vmem %s0, %s309
        %p311 = pneg %p59
        %p312 = pneg %p56
        %s313 = smul.u32 2, %s26
        %p314 = scmp.lt.s32.totalorder %s313, 3
        %s315 = scalar_select %p314, %s313, 3
        %s316 = smul.addr %s315, 8
        %s317 = scalar_lea.vmem %s1, %s316
        %p318 = pneg %p85
        %p319 = pneg %p82
        %p320 = pneg %p106
        %p321 = pneg %p103
        %p322 = pneg %p127
        %p323 = pneg %p124
        %p324 = pneg %p148
        %p325 = pneg %p145
        %p326 = pneg %p169
        %p327 = pneg %p166
        %p328 = pneg %p190
        %p329 = pneg %p187
        %p330 = pneg %p211
        %p331 = pneg %p208
        %p332 = pneg %p241
        %p333 = pneg %p238
        %s334 = sand.u32 %s228, 1
        %s335 = scalar_lea.sflag [#allocation6], %s334
        %s336 = sand.u32 %s228, 1
        %s337 = smul.addr %s336, 8
        %s338 = scalar_lea.vmem [#allocation5], %s337
        %s339 = smul.u32 %s26, 2
        %s340 = sadd.s32 %s339, %s27
        %p341 = scmp.lt.s32.totalorder %s340, 3
        %s342 = scalar_select %p341, %s340, 3
        %s343 = smul.addr %s342, 8
        %s344 = scalar_lea.vmem %s0, %s343
        %s345 = smul.u32 %s26, 2
        %s346 = sadd.s32 %s345, %s27
        %s347 = smul.u32 2, %s26
        %p348 = scmp.lt.s32.totalorder %s347, 3
        %s349 = scalar_select %p348, %s347, 3
        %s350 = smul.addr %s349, 8
        %s351 = scalar_lea.vmem %s1, %s350
        %s352 = smul.u32 2, %s26
        %s353 = smul.u32 %s26, 2
        %s354 = sadd.s32 %s353, %s27
        %p356 = scmp.eq.s32.totalorder %s27, 0
        // Predicated region
        $region53: #{tpu_custom_call.1} parent=51 // pred_check
          %p357 = pneg %p356
        $region54: #{tpu_custom_call.1} parent=51 // pred_check_branch
          %359 = sbr.rel (%p357) target = $region56
        $region55: #{tpu_custom_call.1} parent=51 // pred_region
          %v360 = vld [vmem:[%s351] sm:$0xff]
          %v361 = vld [vmem:[%s351 + $0x8] sm:$0xff]
          %vm362 = vcmask 261120
          %v363 = vsel %vm362, %v360, 0.0
          %364 = vadd.xlane.f32.xlu0 %v363
          %v365 = vpop.xlane.xlu0 %364
          %v366 = vsel %vm362, %v361, 0.0
          %367 = vadd.xlane.f32.xlu0 %v366
          %v368 = vpop.xlane.xlu0 %367
          %v369 = vrcp.pop 32.0
          %v370 = vmul.f32 %v365, %v369
          %v371 = vmul.f32 %v368, %v369
          %v372 = vsub.f32 %v360, %v370
          %v373 = vsub.f32 %v361, %v371
          %v374 = vmul.f32 %v372, %v372
          %v375 = vmul.f32 %v373, %v373
          %v376 = vsel %vm362, %v374, 0.0
          %377 = vadd.xlane.f32.xlu0 %v376
          %v378 = vpop.xlane.xlu0 %377
          %v379 = vsel %vm362, %v375, 0.0
          %380 = vadd.xlane.f32.xlu0 %v379
          %v381 = vpop.xlane.xlu0 %380
          %v382 = vmul.f32 %v378, %v369
          %v383 = vmul.f32 %v381, %v369
          %v384 = vadd.f32 %v382, 1e-05
          %v385 = vadd.f32 %v383, 1e-05
          %v386 = vrsqrt.pop %v384
          %v387 = vrsqrt.pop %v385
          %v388 = vmul.f32 %v372, %v386
          %v389 = vmul.f32 %v373, %v387
          %v390 = vpack.c.bf16 %v389, %v388
          %v391 = vld [vmem:[%s4] sm:$0xf]
          %v392 = vld [vmem:[%s4 + $0x4] sm:$0xf]
          %v393 = vld [vmem:[%s4 + $0x8] sm:$0xf]
          %v394 = vld [vmem:[%s4 + $0xc] sm:$0xf]
          %v399 = vunpack.c.l.b16 %v391
          %v400 = vunpack.c.l.b16 %v392
          %v401 = vunpack.c.l.b16 %v393
          %v402 = vunpack.c.l.b16 %v394
          %v403 = vpack.c.b16 %v400, %v399
          %v404 = vpack.c.b16 %v402, %v401
          %v408 = vsel %vm362, %v390, 0
          %410 = vmatprep.subr.bf16.mxu0 0
          %411 = vmatpush1.bf16.msra.mxu0 %v403
          %412 = vmatprep.subr.bf16.mxu0 0
          %413 = vmatpush1.bf16.msra.mxu0 %v404
          %414 = vmatprep.subr.bf16.mxu0 0
          %415 = vmatpush1.bf16.msra.mxu0 0
          %416 = vmatprep.subr.bf16.mxu0 0
          %417 = vmatpush1.bf16.msra.mxu0 0
          %418 = vmatprep.subr.bf16.mxu0 0
          %419 = vmatpush1.bf16.msra.mxu0 0
          %420 = vmatprep.subr.bf16.mxu0 0
          %421 = vmatpush1.bf16.msra.mxu0 0
          %422 = vmatprep.subr.bf16.mxu0 0
          %423 = vmatpush1.bf16.msra.mxu0 0
          %424 = vmatprep.subr.bf16.mxu0 0
          %425 = vmatpush1.bf16.msra.mxu0 0
          %426 = vmatprep.subr.bf16.mxu0 0
          %427 = vmatpush1.bf16.msra.mxu0 0
          %428 = vmatprep.subr.bf16.mxu0 0
          %429 = vmatpush1.bf16.msra.mxu0 0
          %430 = vmatprep.subr.bf16.mxu0 0
          %431 = vmatpush1.bf16.msra.mxu0 0
          %432 = vmatprep.subr.bf16.mxu0 0
          %433 = vmatpush1.bf16.msra.mxu0 0
          %434 = vmatprep.subr.bf16.mxu0 0
          %435 = vmatpush1.bf16.msra.mxu0 0
          %436 = vmatprep.subr.bf16.mxu0 0
          %437 = vmatpush1.bf16.msra.mxu0 0
          %438 = vmatprep.subr.bf16.mxu0 0
          %439 = vmatpush1.bf16.msra.mxu0 0
          %440 = vmatprep.subr.bf16.mxu0 0
          %441 = vmatpush1.bf16.msra.mxu0 0
          %442 = vmatprep.mubr.bf16.mxu0 0
          %443 = vmatmul.mubr.bf16.gmra.mrb[0].mxu0 %v408
          %v444 = vpop.f32.mrb[0].mxu0
          %v445 = vadd.f32 0.0, %v444
          %v446 = vpop.f32.mrb[0].mxu0
          %v447 = vpop.f32.mrb[0].mxu0
          %v448 = vadd.f32 0.0, %v447
          %v449 = vpop.f32.mrb[0].mxu0
          %450 = vdwg.mxu0
          %v451 = vpack.c.bf16 %v448, %v445
          %vm452 = vcmask 64512
          %453 = vst.msk [vmem:[#allocation2] sm:$0xff] %vm452, %v451
          %v454 = vld [vmem:[%s5] sm:$0xf]
          %v455 = vld [vmem:[%s5 + $0x4] sm:$0xf]
          %v456 = vld [vmem:[%s5 + $0x8] sm:$0xf]
          %v457 = vld [vmem:[%s5 + $0xc] sm:$0xf]
          %v462 = vunpack.c.l.b16 %v454
          %v463 = vunpack.c.l.b16 %v455
          %v464 = vunpack.c.l.b16 %v456
          %v465 = vunpack.c.l.b16 %v457
          %v466 = vpack.c.b16 %v463, %v462
          %v467 = vpack.c.b16 %v465, %v464
          %470 = vmatprep.subr.bf16.mxu0 0
          %471 = vmatpush1.bf16.msra.mxu0 %v466
          %472 = vmatprep.subr.bf16.mxu0 0
          %473 = vmatpush1.bf16.msra.mxu0 %v467
          %474 = vmatprep.subr.bf16.mxu0 0
          %475 = vmatpush1.bf16.msra.mxu0 0
          %476 = vmatprep.subr.bf16.mxu0 0
          %477 = vmatpush1.bf16.msra.mxu0 0
          %478 = vmatprep.subr.bf16.mxu0 0
          %479 = vmatpush1.bf16.msra.mxu0 0
          %480 = vmatprep.subr.bf16.mxu0 0
          %481 = vmatpush1.bf16.msra.mxu0 0
          %482 = vmatprep.subr.bf16.mxu0 0
          %483 = vmatpush1.bf16.msra.mxu0 0
          %484 = vmatprep.subr.bf16.mxu0 0
          %485 = vmatpush1.bf16.msra.mxu0 0
          %486 = vmatprep.subr.bf16.mxu0 0
          %487 = vmatpush1.bf16.msra.mxu0 0
          %488 = vmatprep.subr.bf16.mxu0 0
          %489 = vmatpush1.bf16.msra.mxu0 0
          %490 = vmatprep.subr.bf16.mxu0 0
          %491 = vmatpush1.bf16.msra.mxu0 0
          %492 = vmatprep.subr.bf16.mxu0 0
          %493 = vmatpush1.bf16.msra.mxu0 0
          %494 = vmatprep.subr.bf16.mxu0 0
          %495 = vmatpush1.bf16.msra.mxu0 0
          %496 = vmatprep.subr.bf16.mxu0 0
          %497 = vmatpush1.bf16.msra.mxu0 0
          %498 = vmatprep.subr.bf16.mxu0 0
          %499 = vmatpush1.bf16.msra.mxu0 0
          %500 = vmatprep.subr.bf16.mxu0 0
          %501 = vmatpush1.bf16.msra.mxu0 0
          %502 = vmatprep.mubr.bf16.mxu0 0
          %503 = vmatmul.mubr.bf16.gmra.mrb[0].mxu0 %v408
          %v504 = vpop.f32.mrb[0].mxu0
          %v505 = vadd.f32 0.0, %v504
          %v506 = vpop.f32.mrb[0].mxu0
          %v507 = vpop.f32.mrb[0].mxu0
          %v508 = vadd.f32 0.0, %v507
          %v509 = vpop.f32.mrb[0].mxu0
          %510 = vdwg.mxu0
          %v511 = vpack.c.bf16 %v508, %v505
          %512 = vst.msk [vmem:[#allocation3] sm:$0xff] %vm452, %v511
          %s513 = scalar_lea.vmem %s4, 16
          %v514 = vld [vmem:[%s513] sm:$0xf]
          %v515 = vld [vmem:[%s513 + $0x4] sm:$0xf]
          %v516 = vld [vmem:[%s513 + $0x8] sm:$0xf]
          %v517 = vld [vmem:[%s513 + $0xc] sm:$0xf]
          %v522 = vunpack.c.l.b16 %v514
          %v523 = vunpack.c.l.b16 %v515
          %v524 = vunpack.c.l.b16 %v516
          %v525 = vunpack.c.l.b16 %v517
          %v526 = vpack.c.b16 %v523, %v522
          %v527 = vpack.c.b16 %v525, %v524
          %530 = vmatprep.subr.bf16.mxu0 0
          %531 = vmatpush1.bf16.msra.mxu0 %v526
          %532 = vmatprep.subr.bf16.mxu0 0
          %533 = vmatpush1.bf16.msra.mxu0 %v527
          %534 = vmatprep.subr.bf16.mxu0 0
          %535 = vmatpush1.bf16.msra.mxu0 0
          %536 = vmatprep.subr.bf16.mxu0 0
          %537 = vmatpush1.bf16.msra.mxu0 0
          %538 = vmatprep.subr.bf16.mxu0 0
          %539 = vmatpush1.bf16.msra.mxu0 0
          %540 = vmatprep.subr.bf16.mxu0 0
          %541 = vmatpush1.bf16.msra.mxu0 0
          %542 = vmatprep.subr.bf16.mxu0 0
          %543 = vmatpush1.bf16.msra.mxu0 0
          %544 = vmatprep.subr.bf16.mxu0 0
          %545 = vmatpush1.bf16.msra.mxu0 0
          %546 = vmatprep.subr.bf16.mxu0 0
          %547 = vmatpush1.bf16.msra.mxu0 0
          %548 = vmatprep.subr.bf16.mxu0 0
          %549 = vmatpush1.bf16.msra.mxu0 0
          %550 = vmatprep.subr.bf16.mxu0 0
          %551 = vmatpush1.bf16.msra.mxu0 0
          %552 = vmatprep.subr.bf16.mxu0 0
          %553 = vmatpush1.bf16.msra.mxu0 0
          %554 = vmatprep.subr.bf16.mxu0 0
          %555 = vmatpush1.bf16.msra.mxu0 0
          %556 = vmatprep.subr.bf16.mxu0 0
          %557 = vmatpush1.bf16.msra.mxu0 0
          %558 = vmatprep.subr.bf16.mxu0 0
          %559 = vmatpush1.bf16.msra.mxu0 0
          %560 = vmatprep.subr.bf16.mxu0 0
          %561 = vmatpush1.bf16.msra.mxu0 0
          %562 = vmatprep.mubr.bf16.mxu0 0
          %563 = vmatmul.mubr.bf16.gmra.mrb[0].mxu0 %v408
          %v564 = vpop.f32.mrb[0].mxu0
          %v565 = vadd.f32 0.0, %v564
          %v566 = vpop.f32.mrb[0].mxu0
          %v567 = vpop.f32.mrb[0].mxu0
          %v568 = vadd.f32 0.0, %v567
          %v569 = vpop.f32.mrb[0].mxu0
          %570 = vdwg.mxu0
          %v571 = vpack.c.bf16 %v568, %v565
          %s572 = scalar_lea.vmem [#allocation2], 8
          %573 = vst.msk [vmem:[%s572] sm:$0xff] %vm452, %v571
          %s574 = scalar_lea.vmem %s5, 16
          %v575 = vld [vmem:[%s574] sm:$0xf]
          %v576 = vld [vmem:[%s574 + $0x4] sm:$0xf]
          %v577 = vld [vmem:[%s574 + $0x8] sm:$0xf]
          %v578 = vld [vmem:[%s574 + $0xc] sm:$0xf]
          %v583 = vunpack.c.l.b16 %v575
          %v584 = vunpack.c.l.b16 %v576
          %v585 = vunpack.c.l.b16 %v577
          %v586 = vunpack.c.l.b16 %v578
          %v587 = vpack.c.b16 %v584, %v583
          %v588 = vpack.c.b16 %v586, %v585
          %591 = vmatprep.subr.bf16.mxu0 0
          %592 = vmatpush1.bf16.msra.mxu0 %v587
          %593 = vmatprep.subr.bf16.mxu0 0
          %594 = vmatpush1.bf16.msra.mxu0 %v588
          %595 = vmatprep.subr.bf16.mxu0 0
          %596 = vmatpush1.bf16.msra.mxu0 0
          %597 = vmatprep.subr.bf16.mxu0 0
          %598 = vmatpush1.bf16.msra.mxu0 0
          %599 = vmatprep.subr.bf16.mxu0 0
          %600 = vmatpush1.bf16.msra.mxu0 0
          %601 = vmatprep.subr.bf16.mxu0 0
          %602 = vmatpush1.bf16.msra.mxu0 0
          %603 = vmatprep.subr.bf16.mxu0 0
          %604 = vmatpush1.bf16.msra.mxu0 0
          %605 = vmatprep.subr.bf16.mxu0 0
          %606 = vmatpush1.bf16.msra.mxu0 0
          %607 = vmatprep.subr.bf16.mxu0 0
          %608 = vmatpush1.bf16.msra.mxu0 0
          %609 = vmatprep.subr.bf16.mxu0 0
          %610 = vmatpush1.bf16.msra.mxu0 0
          %611 = vmatprep.subr.bf16.mxu0 0
          %612 = vmatpush1.bf16.msra.mxu0 0
          %613 = vmatprep.subr.bf16.mxu0 0
          %614 = vmatpush1.bf16.msra.mxu0 0
          %615 = vmatprep.subr.bf16.mxu0 0
          %616 = vmatpush1.bf16.msra.mxu0 0
          %617 = vmatprep.subr.bf16.mxu0 0
          %618 = vmatpush1.bf16.msra.mxu0 0
          %619 = vmatprep.subr.bf16.mxu0 0
          %620 = vmatpush1.bf16.msra.mxu0 0
          %621 = vmatprep.subr.bf16.mxu0 0
          %622 = vmatpush1.bf16.msra.mxu0 0
          %623 = vmatprep.mubr.bf16.mxu0 0
          %624 = vmatmul.mubr.bf16.gmra.mrb[0].mxu0 %v408
          %v625 = vpop.f32.mrb[0].mxu0
          %v626 = vadd.f32 0.0, %v625
          %v627 = vpop.f32.mrb[0].mxu0
          %v628 = vpop.f32.mrb[0].mxu0
          %v629 = vadd.f32 0.0, %v628
          %v630 = vpop.f32.mrb[0].mxu0
          %631 = vdwg.mxu0
          %v632 = vpack.c.bf16 %v629, %v626
          %s633 = scalar_lea.vmem [#allocation3], 8
          %634 = vst.msk [vmem:[%s633] sm:$0xff] %vm452, %v632
          %s635 = scalar_lea.vmem %s4, 32
          %v636 = vld [vmem:[%s635] sm:$0xf]
          %v637 = vld [vmem:[%s635 + $0x4] sm:$0xf]
          %v638 = vld [vmem:[%s635 + $0x8] sm:$0xf]
          %v639 = vld [vmem:[%s635 + $0xc] sm:$0xf]
          %v644 = vunpack.c.l.b16 %v636
          %v645 = vunpack.c.l.b16 %v637
          %v646 = vunpack.c.l.b16 %v638
          %v647 = vunpack.c.l.b16 %v639
          %v648 = vpack.c.b16 %v645, %v644
          %v649 = vpack.c.b16 %v647, %v646
          %652 = vmatprep.subr.bf16.mxu0 0
          %653 = vmatpush1.bf16.msra.mxu0 %v648
          %654 = vmatprep.subr.bf16.mxu0 0
          %655 = vmatpush1.bf16.msra.mxu0 %v649
          %656 = vmatprep.subr.bf16.mxu0 0
          %657 = vmatpush1.bf16.msra.mxu0 0
          %658 = vmatprep.subr.bf16.mxu0 0
          %659 = vmatpush1.bf16.msra.mxu0 0
          %660 = vmatprep.subr.bf16.mxu0 0
          %661 = vmatpush1.bf16.msra.mxu0 0
          %662 = vmatprep.subr.bf16.mxu0 0
          %663 = vmatpush1.bf16.msra.mxu0 0
          %664 = vmatprep.subr.bf16.mxu0 0
          %665 = vmatpush1.bf16.msra.mxu0 0
          %666 = vmatprep.subr.bf16.mxu0 0
          %667 = vmatpush1.bf16.msra.mxu0 0
          %668 = vmatprep.subr.bf16.mxu0 0
          %669 = vmatpush1.bf16.msra.mxu0 0
          %670 = vmatprep.subr.bf16.mxu0 0
          %671 = vmatpush1.bf16.msra.mxu0 0
          %672 = vmatprep.subr.bf16.mxu0 0
          %673 = vmatpush1.bf16.msra.mxu0 0
          %674 = vmatprep.subr.bf16.mxu0 0
          %675 = vmatpush1.bf16.msra.mxu0 0
          %676 = vmatprep.subr.bf16.mxu0 0
          %677 = vmatpush1.bf16.msra.mxu0 0
          %678 = vmatprep.subr.bf16.mxu0 0
          %679 = vmatpush1.bf16.msra.mxu0 0
          %680 = vmatprep.subr.bf16.mxu0 0
          %681 = vmatpush1.bf16.msra.mxu0 0
          %682 = vmatprep.subr.bf16.mxu0 0
          %683 = vmatpush1.bf16.msra.mxu0 0
          %684 = vmatprep.mubr.bf16.mxu0 0
          %685 = vmatmul.mubr.bf16.gmra.mrb[0].mxu0 %v408
          %v686 = vpop.f32.mrb[0].mxu0
          %v687 = vadd.f32 0.0, %v686
          %v688 = vpop.f32.mrb[0].mxu0
          %v689 = vpop.f32.mrb[0].mxu0
          %v690 = vadd.f32 0.0, %v689
          %v691 = vpop.f32.mrb[0].mxu0
          %692 = vdwg.mxu0
          %v693 = vpack.c.bf16 %v690, %v687
          %s694 = scalar_lea.vmem [#allocation2], 16
          %695 = vst.msk [vmem:[%s694] sm:$0xff] %vm452, %v693
          %s696 = scalar_lea.vmem %s5, 32
          %v697 = vld [vmem:[%s696] sm:$0xf]
          %v698 = vld [vmem:[%s696 + $0x4] sm:$0xf]
          %v699 = vld [vmem:[%s696 + $0x8] sm:$0xf]
          %v700 = vld [vmem:[%s696 + $0xc] sm:$0xf]
          %v705 = vunpack.c.l.b16 %v697
          %v706 = vunpack.c.l.b16 %v698
          %v707 = vunpack.c.l.b16 %v699
          %v708 = vunpack.c.l.b16 %v700
          %v709 = vpack.c.b16 %v706, %v705
          %v710 = vpack.c.b16 %v708, %v707
          %713 = vmatprep.subr.bf16.mxu0 0
          %714 = vmatpush1.bf16.msra.mxu0 %v709
          %715 = vmatprep.subr.bf16.mxu0 0
          %716 = vmatpush1.bf16.msra.mxu0 %v710
          %717 = vmatprep.subr.bf16.mxu0 0
          %718 = vmatpush1.bf16.msra.mxu0 0
          %719 = vmatprep.subr.bf16.mxu0 0
          %720 = vmatpush1.bf16.msra.mxu0 0
          %721 = vmatprep.subr.bf16.mxu0 0
          %722 = vmatpush1.bf16.msra.mxu0 0
          %723 = vmatprep.subr.bf16.mxu0 0
          %724 = vmatpush1.bf16.msra.mxu0 0
          %725 = vmatprep.subr.bf16.mxu0 0
          %726 = vmatpush1.bf16.msra.mxu0 0
          %727 = vmatprep.subr.bf16.mxu0 0
          %728 = vmatpush1.bf16.msra.mxu0 0
          %729 = vmatprep.subr.bf16.mxu0 0
          %730 = vmatpush1.bf16.msra.mxu0 0
          %731 = vmatprep.subr.bf16.mxu0 0
          %732 = vmatpush1.bf16.msra.mxu0 0
          %733 = vmatprep.subr.bf16.mxu0 0
          %734 = vmatpush1.bf16.msra.mxu0 0
          %735 = vmatprep.subr.bf16.mxu0 0
          %736 = vmatpush1.bf16.msra.mxu0 0
          %737 = vmatprep.subr.bf16.mxu0 0
          %738 = vmatpush1.bf16.msra.mxu0 0
          %739 = vmatprep.subr.bf16.mxu0 0
          %740 = vmatpush1.bf16.msra.mxu0 0
          %741 = vmatprep.subr.bf16.mxu0 0
          %742 = vmatpush1.bf16.msra.mxu0 0
          %743 = vmatprep.subr.bf16.mxu0 0
          %744 = vmatpush1.bf16.msra.mxu0 0
          %745 = vmatprep.mubr.bf16.mxu0 0
          %746 = vmatmul.mubr.bf16.gmra.mrb[0].mxu0 %v408
          %v747 = vpop.f32.mrb[0].mxu0
          %v748 = vadd.f32 0.0, %v747
          %v749 = vpop.f32.mrb[0].mxu0
          %v750 = vpop.f32.mrb[0].mxu0
          %v751 = vadd.f32 0.0, %v750
          %v752 = vpop.f32.mrb[0].mxu0
          %753 = vdwg.mxu0
          %v754 = vpack.c.bf16 %v751, %v748
          %s755 = scalar_lea.vmem [#allocation3], 16
          %756 = vst.msk [vmem:[%s755] sm:$0xff] %vm452, %v754
          %s757 = scalar_lea.vmem %s4, 48
          %v758 = vld [vmem:[%s757] sm:$0xf]
          %v759 = vld [vmem:[%s757 + $0x4] sm:$0xf]
          %v760 = vld [vmem:[%s757 + $0x8] sm:$0xf]
          %v761 = vld [vmem:[%s757 + $0xc] sm:$0xf]
          %v766 = vunpack.c.l.b16 %v758
          %v767 = vunpack.c.l.b16 %v759
          %v768 = vunpack.c.l.b16 %v760
          %v769 = vunpack.c.l.b16 %v761
          %v770 = vpack.c.b16 %v767, %v766
          %v771 = vpack.c.b16 %v769, %v768
          %774 = vmatprep.subr.bf16.mxu0 0
          %775 = vmatpush1.bf16.msra.mxu0 %v770
          %776 = vmatprep.subr.bf16.mxu0 0
          %777 = vmatpush1.bf16.msra.mxu0 %v771
          %778 = vmatprep.subr.bf16.mxu0 0
          %779 = vmatpush1.bf16.msra.mxu0 0
          %780 = vmatprep.subr.bf16.mxu0 0
          %781 = vmatpush1.bf16.msra.mxu0 0
          %782 = vmatprep.subr.bf16.mxu0 0
          %783 = vmatpush1.bf16.msra.mxu0 0
          %784 = vmatprep.subr.bf16.mxu0 0
          %785 = vmatpush1.bf16.msra.mxu0 0
          %786 = vmatprep.subr.bf16.mxu0 0
          %787 = vmatpush1.bf16.msra.mxu0 0
          %788 = vmatprep.subr.bf16.mxu0 0
          %789 = vmatpush1.bf16.msra.mxu0 0
          %790 = vmatprep.subr.bf16.mxu0 0
          %791 = vmatpush1.bf16.msra.mxu0 0
          %792 = vmatprep.subr.bf16.mxu0 0
          %793 = vmatpush1.bf16.msra.mxu0 0
          %794 = vmatprep.subr.bf16.mxu0 0
          %795 = vmatpush1.bf16.msra.mxu0 0
          %796 = vmatprep.subr.bf16.mxu0 0
          %797 = vmatpush1.bf16.msra.mxu0 0
          %798 = vmatprep.subr.bf16.mxu0 0
          %799 = vmatpush1.bf16.msra.mxu0 0
          %800 = vmatprep.subr.bf16.mxu0 0
          %801 = vmatpush1.bf16.msra.mxu0 0
          %802 = vmatprep.subr.bf16.mxu0 0
          %803 = vmatpush1.bf16.msra.mxu0 0
          %804 = vmatprep.subr.bf16.mxu0 0
          %805 = vmatpush1.bf16.msra.mxu0 0
          %806 = vmatprep.mubr.bf16.mxu0 0
          %807 = vmatmul.mubr.bf16.gmra.mrb[0].mxu0 %v408
          %v808 = vpop.f32.mrb[0].mxu0
          %v809 = vadd.f32 0.0, %v808
          %v810 = vpop.f32.mrb[0].mxu0
          %v811 = vpop.f32.mrb[0].mxu0
          %v812 = vadd.f32 0.0, %v811
          %v813 = vpop.f32.mrb[0].mxu0
          %814 = vdwg.mxu0
          %v815 = vpack.c.bf16 %v812, %v809
          %s816 = scalar_lea.vmem [#allocation2], 24
          %817 = vst.msk [vmem:[%s816] sm:$0xff] %vm452, %v815
          %s818 = scalar_lea.vmem %s5, 48
          %v819 = vld [vmem:[%s818] sm:$0xf]
          %v820 = vld [vmem:[%s818 + $0x4] sm:$0xf]
          %v821 = vld [vmem:[%s818 + $0x8] sm:$0xf]
          %v822 = vld [vmem:[%s818 + $0xc] sm:$0xf]
          %v827 = vunpack.c.l.b16 %v819
          %v828 = vunpack.c.l.b16 %v820
          %v829 = vunpack.c.l.b16 %v821
          %v830 = vunpack.c.l.b16 %v822
          %v831 = vpack.c.b16 %v828, %v827
          %v832 = vpack.c.b16 %v830, %v829
          %835 = vmatprep.subr.bf16.mxu0 0
          %836 = vmatpush1.bf16.msra.mxu0 %v831
          %837 = vmatprep.subr.bf16.mxu0 0
          %838 = vmatpush1.bf16.msra.mxu0 %v832
          %839 = vmatprep.subr.bf16.mxu0 0
          %840 = vmatpush1.bf16.msra.mxu0 0
          %841 = vmatprep.subr.bf16.mxu0 0
          %842 = vmatpush1.bf16.msra.mxu0 0
          %843 = vmatprep.subr.bf16.mxu0 0
          %844 = vmatpush1.bf16.msra.mxu0 0
          %845 = vmatprep.subr.bf16.mxu0 0
          %846 = vmatpush1.bf16.msra.mxu0 0
          %847 = vmatprep.subr.bf16.mxu0 0
          %848 = vmatpush1.bf16.msra.mxu0 0
          %849 = vmatprep.subr.bf16.mxu0 0
          %850 = vmatpush1.bf16.msra.mxu0 0
          %851 = vmatprep.subr.bf16.mxu0 0
          %852 = vmatpush1.bf16.msra.mxu0 0
          %853 = vmatprep.subr.bf16.mxu0 0
          %854 = vmatpush1.bf16.msra.mxu0 0
          %855 = vmatprep.subr.bf16.mxu0 0
          %856 = vmatpush1.bf16.msra.mxu0 0
          %857 = vmatprep.subr.bf16.mxu0 0
          %858 = vmatpush1.bf16.msra.mxu0 0
          %859 = vmatprep.subr.bf16.mxu0 0
          %860 = vmatpush1.bf16.msra.mxu0 0
          %861 = vmatprep.subr.bf16.mxu0 0
          %862 = vmatpush1.bf16.msra.mxu0 0
          %863 = vmatprep.subr.bf16.mxu0 0
          %864 = vmatpush1.bf16.msra.mxu0 0
          %865 = vmatprep.subr.bf16.mxu0 0
          %866 = vmatpush1.bf16.msra.mxu0 0
          %867 = vmatprep.mubr.bf16.mxu0 0
          %868 = vmatmul.mubr.bf16.gmra.mrb[0].mxu0 %v408
          %v869 = vpop.f32.mrb[0].mxu0
          %v870 = vadd.f32 0.0, %v869
          %v871 = vpop.f32.mrb[0].mxu0
          %v872 = vpop.f32.mrb[0].mxu0
          %v873 = vadd.f32 0.0, %v872
          %v874 = vpop.f32.mrb[0].mxu0
          %875 = vdwg.mxu0
          %v876 = vpack.c.bf16 %v873, %v870
          %s877 = scalar_lea.vmem [#allocation3], 24
          %878 = vst.msk [vmem:[%s877] sm:$0xff] %vm452, %v876
        $region56: #{tpu_custom_call.1} parent=51 // pred_fallthru
          _
        %v879 = vld [vmem:[%s344] sm:$0xff]
        %vm880 = vcmask 261120
        %v881 = vsel %vm880, %v879, 0.0
        %882 = vadd.xlane.f32.xlu0 %v881
        %v883 = vpop.xlane.xlu0 %882
        %v884 = vrcp.pop 32.0
        %v885 = vmul.f32 %v883, %v884
        %v886 = vsub.f32 %v879, %v885
        %v887 = vmul.f32 %v886, %v886
        %v888 = vsel %vm880, %v887, 0.0
        %889 = vadd.xlane.f32.xlu0 %v888
        %v890 = vpop.xlane.xlu0 %889
        %v891 = vmul.f32 %v890, %v884
        %v892 = vadd.f32 %v891, 1e-05
        %v893 = vrsqrt.pop %v892
        %v894 = vmul.f32 %v886, %v893
        %v895 = vpack.c.bf16 %v894, %v894
        %v896 = vld [vmem:[%s2] sm:$0xf]
        %v897 = vld [vmem:[%s2 + $0x4] sm:$0xf]
        %v898 = vld [vmem:[%s2 + $0x8] sm:$0xf]
        %v899 = vld [vmem:[%s2 + $0xc] sm:$0xf]
        %v900 = vld [vmem:[%s3] sm:$0x1]
        %v902 = vlaneseq
        %v903 = vshrl.u32 %v902, 7
        %v904 = vsub.s32 0, %v903
        %v905 = vrot.slane %v900, %v904
        %v911 = vunpack.c.l.b16 %v896
        %v912 = vunpack.c.l.b16 %v897
        %v913 = vunpack.c.l.b16 %v898
        %v914 = vunpack.c.l.b16 %v899
        %v915 = vpack.c.b16 %v912, %v911
        %v916 = vpack.c.b16 %v914, %v913
        %v920 = vsel %vm880, %v895, 0
        %922 = vmatprep.subr.bf16.mxu0 0
        %923 = vmatpush1.bf16.msra.mxu0 %v915
        %924 = vmatprep.subr.bf16.mxu0 0
        %925 = vmatpush1.bf16.msra.mxu0 %v916
        %926 = vmatprep.subr.bf16.mxu0 0
        %927 = vmatpush1.bf16.msra.mxu0 0
        %928 = vmatprep.subr.bf16.mxu0 0
        %929 = vmatpush1.bf16.msra.mxu0 0
        %930 = vmatprep.subr.bf16.mxu0 0
        %931 = vmatpush1.bf16.msra.mxu0 0
        %932 = vmatprep.subr.bf16.mxu0 0
        %933 = vmatpush1.bf16.msra.mxu0 0
        %934 = vmatprep.subr.bf16.mxu0 0
        %935 = vmatpush1.bf16.msra.mxu0 0
        %936 = vmatprep.subr.bf16.mxu0 0
        %937 = vmatpush1.bf16.msra.mxu0 0
        %938 = vmatprep.subr.bf16.mxu0 0
        %939 = vmatpush1.bf16.msra.mxu0 0
        %940 = vmatprep.subr.bf16.mxu0 0
        %941 = vmatpush1.bf16.msra.mxu0 0
        %942 = vmatprep.subr.bf16.mxu0 0
        %943 = vmatpush1.bf16.msra.mxu0 0
        %944 = vmatprep.subr.bf16.mxu0 0
        %945 = vmatpush1.bf16.msra.mxu0 0
        %946 = vmatprep.subr.bf16.mxu0 0
        %947 = vmatpush1.bf16.msra.mxu0 0
        %948 = vmatprep.subr.bf16.mxu0 0
        %949 = vmatpush1.bf16.msra.mxu0 0
        %950 = vmatprep.subr.bf16.mxu0 0
        %951 = vmatpush1.bf16.msra.mxu0 0
        %952 = vmatprep.subr.bf16.mxu0 0
        %953 = vmatpush1.bf16.msra.mxu0 0
        %954 = vmatprep.mubr.bf16.mxu0 0
        %955 = vmatmul.mubr.bf16.gmra.mrb[0].mxu0 %v920
        %v956 = vpop.f32.mrb[0].mxu0
        %v957 = vadd.f32 %v905, %v956
        %v958 = vpop.f32.mrb[0].mxu0
        %v959 = vpop.f32.mrb[0].mxu0
        %v960 = vpop.f32.mrb[0].mxu0
        %961 = vdwg.mxu0
        %v962 = vpack.c.bf16 %v957, %v957
        %v963 = vld [vmem:[#allocation2] sm:$0xff]
        %vm964 = vcmask 64512
        %v966 = vsel %vm964, %v962, 0
        %v969 = vsel %vm964, %v963, 0
        %971 = vmatprep.subr.bf16.mxu0 0
        %972 = vmatpush1.bf16.xpose.msra.mxu0 %v969
        %973 = vmatprep.subr.bf16.mxu0 0
        %974 = vmatpush1.bf16.xpose.msra.mxu0 0
        %975 = vmatprep.subr.bf16.mxu0 0
        %976 = vmatpush1.bf16.xpose.msra.mxu0 0
        %977 = vmatprep.subr.bf16.mxu0 0
        %978 = vmatpush1.bf16.xpose.msra.mxu0 0
        %979 = vmatprep.subr.bf16.mxu0 0
        %980 = vmatpush1.bf16.xpose.msra.mxu0 0
        %981 = vmatprep.subr.bf16.mxu0 0
        %982 = vmatpush1.bf16.xpose.msra.mxu0 0
        %983 = vmatprep.subr.bf16.mxu0 0
        %984 = vmatpush1.bf16.xpose.msra.mxu0 0
        %985 = vmatprep.subr.bf16.mxu0 0
        %986 = vmatpush1.bf16.xpose.msra.mxu0 0
        %987 = vmatprep.subr.bf16.mxu0 0
        %988 = vmatpush1.bf16.xpose.msra.mxu0 0
        %989 = vmatprep.subr.bf16.mxu0 0
        %990 = vmatpush1.bf16.xpose.msra.mxu0 0
        %991 = vmatprep.subr.bf16.mxu0 0
        %992 = vmatpush1.bf16.xpose.msra.mxu0 0
        %993 = vmatprep.subr.bf16.mxu0 0
        %994 = vmatpush1.bf16.xpose.msra.mxu0 0
        %995 = vmatprep.subr.bf16.mxu0 0
        %996 = vmatpush1.bf16.xpose.msra.mxu0 0
        %997 = vmatprep.subr.bf16.mxu0 0
        %998 = vmatpush1.bf16.xpose.msra.mxu0 0
        %999 = vmatprep.subr.bf16.mxu0 0
        %1000 = vmatpush1.bf16.xpose.msra.mxu0 0
        %1001 = vmatprep.subr.bf16.mxu0 0
        %1002 = vmatpush1.bf16.xpose.msra.mxu0 0
        %1003 = vmatprep.mubr.bf16.mxu0 0
        %1004 = vmatmul.mubr.bf16.gmra.mrb[0].mxu0 %v966
        %v1005 = vpop.f32.mrb[0].mxu0
        %v1006 = vadd.f32 0.0, %v1005
        %v1007 = vpop.f32.mrb[0].mxu0
        %v1008 = vpop.f32.mrb[0].mxu0
        %v1009 = vpop.f32.mrb[0].mxu0
        %1010 = vdwg.mxu0
        %vm1011 = vcmask 130048
        %v1012 = vsel %vm1011, %v1006, -inf
        %1013 = vmax.xlane.f32.xlu0 %v1012
        %v1014 = vpop.xlane.xlu0 %1013
        %v1015 = vsub.f32 %v1006, %v1014
        %v1016 = vmul.f32 %v1015, 1.442695
        %v1017 = vpow.pop %v1016
        %v1018 = vsel %vm1011, %v1017, 0.0
        %1019 = vadd.xlane.f32.xlu0 %v1018
        %v1020 = vpop.xlane.xlu0 %1019
        %v1021 = vpack.c.bf16 %v1017, %v1017
        %v1022 = vld [vmem:[#allocation3] sm:$0xff]
        %v1024 = vsel %vm1011, %v1021, 0
        %1026 = vmatprep.subr.bf16.mxu0 0
        %1027 = vmatpush1.bf16.msra.mxu0 %v1022
        %1028 = vmatprep.subr.bf16.mxu0 0
        %1029 = vmatpush1.bf16.msra.mxu0 0
        %1030 = vmatprep.subr.bf16.mxu0 0
        %1031 = vmatpush1.bf16.msra.mxu0 0
        %1032 = vmatprep.subr.bf16.mxu0 0
        %1033 = vmatpush1.bf16.msra.mxu0 0
        %1034 = vmatprep.subr.bf16.mxu0 0
        %1035 = vmatpush1.bf16.msra.mxu0 0
        %1036 = vmatprep.subr.bf16.mxu0 0
        %1037 = vmatpush1.bf16.msra.mxu0 0
        %1038 = vmatprep.subr.bf16.mxu0 0
        %1039 = vmatpush1.bf16.msra.mxu0 0
        %1040 = vmatprep.subr.bf16.mxu0 0
        %1041 = vmatpush1.bf16.msra.mxu0 0
        %1042 = vmatprep.subr.bf16.mxu0 0
        %1043 = vmatpush1.bf16.msra.mxu0 0
        %1044 = vmatprep.subr.bf16.mxu0 0
        %1045 = vmatpush1.bf16.msra.mxu0 0
        %1046 = vmatprep.subr.bf16.mxu0 0
        %1047 = vmatpush1.bf16.msra.mxu0 0
        %1048 = vmatprep.subr.bf16.mxu0 0
        %1049 = vmatpush1.bf16.msra.mxu0 0
        %1050 = vmatprep.subr.bf16.mxu0 0
        %1051 = vmatpush1.bf16.msra.mxu0 0
        %1052 = vmatprep.subr.bf16.mxu0 0
        %1053 = vmatpush1.bf16.msra.mxu0 0
        %1054 = vmatprep.subr.bf16.mxu0 0
        %1055 = vmatpush1.bf16.msra.mxu0 0
        %1056 = vmatprep.subr.bf16.mxu0 0
        %1057 = vmatpush1.bf16.msra.mxu0 0
        %1058 = vmatprep.mubr.bf16.mxu0 0
        %1059 = vmatmul.mubr.bf16.gmra.mrb[0].mxu0 %v1024
        %v1060 = vpop.f32.mrb[0].mxu0
        %v1061 = vadd.f32 0.0, %v1060
        %v1062 = vpop.f32.mrb[0].mxu0
        %v1063 = vpop.f32.mrb[0].mxu0
        %v1064 = vpop.f32.mrb[0].mxu0
        %1065 = vdwg.mxu0
        %v1066 = vrcp.pop %v1020
        %v1067 = vmul.f32 %v1061, %v1066
        %v1068 = vpack.c.bf16 %v1067, %v1067
        %vm1069 = vcmask 60416
        %1070 = vst.msk [vmem:[#allocation4] sm:$0xf] %vm1069, %v1068
        %s1071 = scalar_lea.vmem %s2, 16
        %v1072 = vld [vmem:[%s1071] sm:$0xf]
        %v1073 = vld [vmem:[%s1071 + $0x4] sm:$0xf]
        %v1074 = vld [vmem:[%s1071 + $0x8] sm:$0xf]
        %v1075 = vld [vmem:[%s1071 + $0xc] sm:$0xf]
        %s1076 = scalar_lea.vmem %s3, 1
        %v1077 = vld [vmem:[%s1076] sm:$0x1]
        %v1079 = vlaneseq
        %v1080 = vshrl.u32 %v1079, 7
        %v1081 = vsub.s32 0, %v1080
        %v1082 = vrot.slane %v1077, %v1081
        %v1088 = vunpack.c.l.b16 %v1072
        %v1089 = vunpack.c.l.b16 %v1073
        %v1090 = vunpack.c.l.b16 %v1074
        %v1091 = vunpack.c.l.b16 %v1075
        %v1092 = vpack.c.b16 %v1089, %v1088
        %v1093 = vpack.c.b16 %v1091, %v1090
        %1096 = vmatprep.subr.bf16.mxu0 0
        %1097 = vmatpush1.bf16.msra.mxu0 %v1092
        %1098 = vmatprep.subr.bf16.mxu0 0
        %1099 = vmatpush1.bf16.msra.mxu0 %v1093
        %1100 = vmatprep.subr.bf16.mxu0 0
        %1101 = vmatpush1.bf16.msra.mxu0 0
        %1102 = vmatprep.subr.bf16.mxu0 0
        %1103 = vmatpush1.bf16.msra.mxu0 0
        %1104 = vmatprep.subr.bf16.mxu0 0
        %1105 = vmatpush1.bf16.msra.mxu0 0
        %1106 = vmatprep.subr.bf16.mxu0 0
        %1107 = vmatpush1.bf16.msra.mxu0 0
        %1108 = vmatprep.subr.bf16.mxu0 0
        %1109 = vmatpush1.bf16.msra.mxu0 0
        %1110 = vmatprep.subr.bf16.mxu0 0
        %1111 = vmatpush1.bf16.msra.mxu0 0
        %1112 = vmatprep.subr.bf16.mxu0 0
        %1113 = vmatpush1.bf16.msra.mxu0 0
        %1114 = vmatprep.subr.bf16.mxu0 0
        %1115 = vmatpush1.bf16.msra.mxu0 0
        %1116 = vmatprep.subr.bf16.mxu0 0
        %1117 = vmatpush1.bf16.msra.mxu0 0
        %1118 = vmatprep.subr.bf16.mxu0 0
        %1119 = vmatpush1.bf16.msra.mxu0 0
        %1120 = vmatprep.subr.bf16.mxu0 0
        %1121 = vmatpush1.bf16.msra.mxu0 0
        %1122 = vmatprep.subr.bf16.mxu0 0
        %1123 = vmatpush1.bf16.msra.mxu0 0
        %1124 = vmatprep.subr.bf16.mxu0 0
        %1125 = vmatpush1.bf16.msra.mxu0 0
        %1126 = vmatprep.subr.bf16.mxu0 0
        %1127 = vmatpush1.bf16.msra.mxu0 0
        %1128 = vmatprep.mubr.bf16.mxu0 0
        %1129 = vmatmul.mubr.bf16.gmra.mrb[0].mxu0 %v920
        %v1130 = vpop.f32.mrb[0].mxu0
        %v1131 = vadd.f32 %v1082, %v1130
        %v1132 = vpop.f32.mrb[0].mxu0
        %v1133 = vpop.f32.mrb[0].mxu0
        %v1134 = vpop.f32.mrb[0].mxu0
        %1135 = vdwg.mxu0
        %v1136 = vpack.c.bf16 %v1131, %v1131
        %s1137 = scalar_lea.vmem [#allocation2], 8
        %v1138 = vld [vmem:[%s1137] sm:$0xff]
        %v1140 = vsel %vm964, %v1136, 0
        %v1143 = vsel %vm964, %v1138, 0
        %1145 = vmatprep.subr.bf16.mxu0 0
        %1146 = vmatpush1.bf16.xpose.msra.mxu0 %v1143
        %1147 = vmatprep.subr.bf16.mxu0 0
        %1148 = vmatpush1.bf16.xpose.msra.mxu0 0
        %1149 = vmatprep.subr.bf16.mxu0 0
        %1150 = vmatpush1.bf16.xpose.msra.mxu0 0
        %1151 = vmatprep.subr.bf16.mxu0 0
        %1152 = vmatpush1.bf16.xpose.msra.mxu0 0
        %1153 = vmatprep.subr.bf16.mxu0 0
        %1154 = vmatpush1.bf16.xpose.msra.mxu0 0
        %1155 = vmatprep.subr.bf16.mxu0 0
        %1156 = vmatpush1.bf16.xpose.msra.mxu0 0
        %1157 = vmatprep.subr.bf16.mxu0 0
        %1158 = vmatpush1.bf16.xpose.msra.mxu0 0
        %1159 = vmatprep.subr.bf16.mxu0 0
        %1160 = vmatpush1.bf16.xpose.msra.mxu0 0
        %1161 = vmatprep.subr.bf16.mxu0 0
        %1162 = vmatpush1.bf16.xpose.msra.mxu0 0
        %1163 = vmatprep.subr.bf16.mxu0 0
        %1164 = vmatpush1.bf16.xpose.msra.mxu0 0
        %1165 = vmatprep.subr.bf16.mxu0 0
        %1166 = vmatpush1.bf16.xpose.msra.mxu0 0
        %1167 = vmatprep.subr.bf16.mxu0 0
        %1168 = vmatpush1.bf16.xpose.msra.mxu0 0
        %1169 = vmatprep.subr.bf16.mxu0 0
        %1170 = vmatpush1.bf16.xpose.msra.mxu0 0
        %1171 = vmatprep.subr.bf16.mxu0 0
        %1172 = vmatpush1.bf16.xpose.msra.mxu0 0
        %1173 = vmatprep.subr.bf16.mxu0 0
        %1174 = vmatpush1.bf16.xpose.msra.mxu0 0
        %1175 = vmatprep.subr.bf16.mxu0 0
        %1176 = vmatpush1.bf16.xpose.msra.mxu0 0
        %1177 = vmatprep.mubr.bf16.mxu0 0
        %1178 = vmatmul.mubr.bf16.gmra.mrb[0].mxu0 %v1140
        %v1179 = vpop.f32.mrb[0].mxu0
        %v1180 = vadd.f32 0.0, %v1179
        %v1181 = vpop.f32.mrb[0].mxu0
        %v1182 = vpop.f32.mrb[0].mxu0
        %v1183 = vpop.f32.mrb[0].mxu0
        %1184 = vdwg.mxu0
        %v1185 = vsel %vm1011, %v1180, -inf
        %1186 = vmax.xlane.f32.xlu0 %v1185
        %v1187 = vpop.xlane.xlu0 %1186
        %v1188 = vsub.f32 %v1180, %v1187
        %v1189 = vmul.f32 %v1188, 1.442695
        %v1190 = vpow.pop %v1189
        %v1191 = vsel %vm1011, %v1190, 0.0
        %1192 = vadd.xlane.f32.xlu0 %v1191
        %v1193 = vpop.xlane.xlu0 %1192
        %v1194 = vpack.c.bf16 %v1190, %v1190
        %s1195 = scalar_lea.vmem [#allocation3], 8
        %v1196 = vld [vmem:[%s1195] sm:$0xff]
        %v1198 = vsel %vm1011, %v1194, 0
        %1200 = vmatprep.subr.bf16.mxu0 0
        %1201 = vmatpush1.bf16.msra.mxu0 %v1196
        %1202 = vmatprep.subr.bf16.mxu0 0
        %1203 = vmatpush1.bf16.msra.mxu0 0
        %1204 = vmatprep.subr.bf16.mxu0 0
        %1205 = vmatpush1.bf16.msra.mxu0 0
        %1206 = vmatprep.subr.bf16.mxu0 0
        %1207 = vmatpush1.bf16.msra.mxu0 0
        %1208 = vmatprep.subr.bf16.mxu0 0
        %1209 = vmatpush1.bf16.msra.mxu0 0
        %1210 = vmatprep.subr.bf16.mxu0 0
        %1211 = vmatpush1.bf16.msra.mxu0 0
        %1212 = vmatprep.subr.bf16.mxu0 0
        %1213 = vmatpush1.bf16.msra.mxu0 0
        %1214 = vmatprep.subr.bf16.mxu0 0
        %1215 = vmatpush1.bf16.msra.mxu0 0
        %1216 = vmatprep.subr.bf16.mxu0 0
        %1217 = vmatpush1.bf16.msra.mxu0 0
        %1218 = vmatprep.subr.bf16.mxu0 0
        %1219 = vmatpush1.bf16.msra.mxu0 0
        %1220 = vmatprep.subr.bf16.mxu0 0
        %1221 = vmatpush1.bf16.msra.mxu0 0
        %1222 = vmatprep.subr.bf16.mxu0 0
        %1223 = vmatpush1.bf16.msra.mxu0 0
        %1224 = vmatprep.subr.bf16.mxu0 0
        %1225 = vmatpush1.bf16.msra.mxu0 0
        %1226 = vmatprep.subr.bf16.mxu0 0
        %1227 = vmatpush1.bf16.msra.mxu0 0
        %1228 = vmatprep.subr.bf16.mxu0 0
        %1229 = vmatpush1.bf16.msra.mxu0 0
        %1230 = vmatprep.subr.bf16.mxu0 0
        %1231 = vmatpush1.bf16.msra.mxu0 0
        %1232 = vmatprep.mubr.bf16.mxu0 0
        %1233 = vmatmul.mubr.bf16.gmra.mrb[0].mxu0 %v1198
        %v1234 = vpop.f32.mrb[0].mxu0
        %v1235 = vadd.f32 0.0, %v1234
        %v1236 = vpop.f32.mrb[0].mxu0
        %v1237 = vpop.f32.mrb[0].mxu0
        %v1238 = vpop.f32.mrb[0].mxu0
        %1239 = vdwg.mxu0
        %v1240 = vrcp.pop %v1193
        %v1241 = vmul.f32 %v1235, %v1240
        %v1242 = vpack.c.bf16 %v1241, %v1241
        %v1244 = vunpack.c.l.b16 %v1242
        %v1245 = vpack.c.b16 %v1244, %v1244
        %1246 = vrot.lane.b32.xlu0 %v1245, 8
        %v1247 = vpop.permute.xlu0 %1246
        %vm1249 = vcmask 126016
        %1250 = vst.msk [vmem:[#allocation4] sm:$0xf] %vm1249, %v1247
        %s1251 = scalar_lea.vmem %s2, 32
        %v1252 = vld [vmem:[%s1251] sm:$0xf]
        %v1253 = vld [vmem:[%s1251 + $0x4] sm:$0xf]
        %v1254 = vld [vmem:[%s1251 + $0x8] sm:$0xf]
        %v1255 = vld [vmem:[%s1251 + $0xc] sm:$0xf]
        %s1256 = scalar_lea.vmem %s3, 2
        %v1257 = vld [vmem:[%s1256] sm:$0x1]
        %v1259 = vlaneseq
        %v1260 = vshrl.u32 %v1259, 7
        %v1261 = vsub.s32 0, %v1260
        %v1262 = vrot.slane %v1257, %v1261
        %v1268 = vunpack.c.l.b16 %v1252
        %v1269 = vunpack.c.l.b16 %v1253
        %v1270 = vunpack.c.l.b16 %v1254
        %v1271 = vunpack.c.l.b16 %v1255
        %v1272 = vpack.c.b16 %v1269, %v1268
        %v1273 = vpack.c.b16 %v1271, %v1270
        %1276 = vmatprep.subr.bf16.mxu0 0
        %1277 = vmatpush1.bf16.msra.mxu0 %v1272
        %1278 = vmatprep.subr.bf16.mxu0 0
        %1279 = vmatpush1.bf16.msra.mxu0 %v1273
        %1280 = vmatprep.subr.bf16.mxu0 0
        %1281 = vmatpush1.bf16.msra.mxu0 0
        %1282 = vmatprep.subr.bf16.mxu0 0
        %1283 = vmatpush1.bf16.msra.mxu0 0
        %1284 = vmatprep.subr.bf16.mxu0 0
        %1285 = vmatpush1.bf16.msra.mxu0 0
        %1286 = vmatprep.subr.bf16.mxu0 0
        %1287 = vmatpush1.bf16.msra.mxu0 0
        %1288 = vmatprep.subr.bf16.mxu0 0
        %1289 = vmatpush1.bf16.msra.mxu0 0
        %1290 = vmatprep.subr.bf16.mxu0 0
        %1291 = vmatpush1.bf16.msra.mxu0 0
        %1292 = vmatprep.subr.bf16.mxu0 0
        %1293 = vmatpush1.bf16.msra.mxu0 0
        %1294 = vmatprep.subr.bf16.mxu0 0
        %1295 = vmatpush1.bf16.msra.mxu0 0
        %1296 = vmatprep.subr.bf16.mxu0 0
        %1297 = vmatpush1.bf16.msra.mxu0 0
        %1298 = vmatprep.subr.bf16.mxu0 0
        %1299 = vmatpush1.bf16.msra.mxu0 0
        %1300 = vmatprep.subr.bf16.mxu0 0
        %1301 = vmatpush1.bf16.msra.mxu0 0
        %1302 = vmatprep.subr.bf16.mxu0 0
        %1303 = vmatpush1.bf16.msra.mxu0 0
        %1304 = vmatprep.subr.bf16.mxu0 0
        %1305 = vmatpush1.bf16.msra.mxu0 0
        %1306 = vmatprep.subr.bf16.mxu0 0
        %1307 = vmatpush1.bf16.msra.mxu0 0
        %1308 = vmatprep.mubr.bf16.mxu0 0
        %1309 = vmatmul.mubr.bf16.gmra.mrb[0].mxu0 %v920
        %v1310 = vpop.f32.mrb[0].mxu0
        %v1311 = vadd.f32 %v1262, %v1310
        %v1312 = vpop.f32.mrb[0].mxu0
        %v1313 = vpop.f32.mrb[0].mxu0
        %v1314 = vpop.f32.mrb[0].mxu0
        %1315 = vdwg.mxu0
        %v1316 = vpack.c.bf16 %v1311, %v1311
        %s1317 = scalar_lea.vmem [#allocation2], 16
        %v1318 = vld [vmem:[%s1317] sm:$0xff]
        %v1320 = vsel %vm964, %v1316, 0
        %v1323 = vsel %vm964, %v1318, 0
        %1325 = vmatprep.subr.bf16.mxu0 0
        %1326 = vmatpush1.bf16.xpose.msra.mxu0 %v1323
        %1327 = vmatprep.subr.bf16.mxu0 0
        %1328 = vmatpush1.bf16.xpose.msra.mxu0 0
        %1329 = vmatprep.subr.bf16.mxu0 0
        %1330 = vmatpush1.bf16.xpose.msra.mxu0 0
        %1331 = vmatprep.subr.bf16.mxu0 0
        %1332 = vmatpush1.bf16.xpose.msra.mxu0 0
        %1333 = vmatprep.subr.bf16.mxu0 0
        %1334 = vmatpush1.bf16.xpose.msra.mxu0 0
        %1335 = vmatprep.subr.bf16.mxu0 0
        %1336 = vmatpush1.bf16.xpose.msra.mxu0 0
        %1337 = vmatprep.subr.bf16.mxu0 0
        %1338 = vmatpush1.bf16.xpose.msra.mxu0 0
        %1339 = vmatprep.subr.bf16.mxu0 0
        %1340 = vmatpush1.bf16.xpose.msra.mxu0 0
        %1341 = vmatprep.subr.bf16.mxu0 0
        %1342 = vmatpush1.bf16.xpose.msra.mxu0 0
        %1343 = vmatprep.subr.bf16.mxu0 0
        %1344 = vmatpush1.bf16.xpose.msra.mxu0 0
        %1345 = vmatprep.subr.bf16.mxu0 0
        %1346 = vmatpush1.bf16.xpose.msra.mxu0 0
        %1347 = vmatprep.subr.bf16.mxu0 0
        %1348 = vmatpush1.bf16.xpose.msra.mxu0 0
        %1349 = vmatprep.subr.bf16.mxu0 0
        %1350 = vmatpush1.bf16.xpose.msra.mxu0 0
        %1351 = vmatprep.subr.bf16.mxu0 0
        %1352 = vmatpush1.bf16.xpose.msra.mxu0 0
        %1353 = vmatprep.subr.bf16.mxu0 0
        %1354 = vmatpush1.bf16.xpose.msra.mxu0 0
        %1355 = vmatprep.subr.bf16.mxu0 0
        %1356 = vmatpush1.bf16.xpose.msra.mxu0 0
        %1357 = vmatprep.mubr.bf16.mxu0 0
        %1358 = vmatmul.mubr.bf16.gmra.mrb[0].mxu0 %v1320
        %v1359 = vpop.f32.mrb[0].mxu0
        %v1360 = vadd.f32 0.0, %v1359
        %v1361 = vpop.f32.mrb[0].mxu0
        %v1362 = vpop.f32.mrb[0].mxu0
        %v1363 = vpop.f32.mrb[0].mxu0
        %1364 = vdwg.mxu0
        %v1365 = vsel %vm1011, %v1360, -inf
        %1366 = vmax.xlane.f32.xlu0 %v1365
        %v1367 = vpop.xlane.xlu0 %1366
        %v1368 = vsub.f32 %v1360, %v1367
        %v1369 = vmul.f32 %v1368, 1.442695
        %v1370 = vpow.pop %v1369
        %v1371 = vsel %vm1011, %v1370, 0.0
        %1372 = vadd.xlane.f32.xlu0 %v1371
        %v1373 = vpop.xlane.xlu0 %1372
        %v1374 = vpack.c.bf16 %v1370, %v1370
        %s1375 = scalar_lea.vmem [#allocation3], 16
        %v1376 = vld [vmem:[%s1375] sm:$0xff]
        %v1378 = vsel %vm1011, %v1374, 0
        %1380 = vmatprep.subr.bf16.mxu0 0
        %1381 = vmatpush1.bf16.msra.mxu0 %v1376
        %1382 = vmatprep.subr.bf16.mxu0 0
        %1383 = vmatpush1.bf16.msra.mxu0 0
        %1384 = vmatprep.subr.bf16.mxu0 0
        %1385 = vmatpush1.bf16.msra.mxu0 0
        %1386 = vmatprep.subr.bf16.mxu0 0
        %1387 = vmatpush1.bf16.msra.mxu0 0
        %1388 = vmatprep.subr.bf16.mxu0 0
        %1389 = vmatpush1.bf16.msra.mxu0 0
        %1390 = vmatprep.subr.bf16.mxu0 0
        %1391 = vmatpush1.bf16.msra.mxu0 0
        %1392 = vmatprep.subr.bf16.mxu0 0
        %1393 = vmatpush1.bf16.msra.mxu0 0
        %1394 = vmatprep.subr.bf16.mxu0 0
        %1395 = vmatpush1.bf16.msra.mxu0 0
        %1396 = vmatprep.subr.bf16.mxu0 0
        %1397 = vmatpush1.bf16.msra.mxu0 0
        %1398 = vmatprep.subr.bf16.mxu0 0
        %1399 = vmatpush1.bf16.msra.mxu0 0
        %1400 = vmatprep.subr.bf16.mxu0 0
        %1401 = vmatpush1.bf16.msra.mxu0 0
        %1402 = vmatprep.subr.bf16.mxu0 0
        %1403 = vmatpush1.bf16.msra.mxu0 0
        %1404 = vmatprep.subr.bf16.mxu0 0
        %1405 = vmatpush1.bf16.msra.mxu0 0
        %1406 = vmatprep.subr.bf16.mxu0 0
        %1407 = vmatpush1.bf16.msra.mxu0 0
        %1408 = vmatprep.subr.bf16.mxu0 0
        %1409 = vmatpush1.bf16.msra.mxu0 0
        %1410 = vmatprep.subr.bf16.mxu0 0
        %1411 = vmatpush1.bf16.msra.mxu0 0
        %1412 = vmatprep.mubr.bf16.mxu0 0
        %1413 = vmatmul.mubr.bf16.gmra.mrb[0].mxu0 %v1378
        %v1414 = vpop.f32.mrb[0].mxu0
        %v1415 = vadd.f32 0.0, %v1414
        %v1416 = vpop.f32.mrb[0].mxu0
        %v1417 = vpop.f32.mrb[0].mxu0
        %v1418 = vpop.f32.mrb[0].mxu0
        %1419 = vdwg.mxu0
        %v1420 = vrcp.pop %v1373
        %v1421 = vmul.f32 %v1415, %v1420
        %v1422 = vpack.c.bf16 %v1421, %v1421
        %v1424 = vunpack.c.l.b16 %v1422
        %v1425 = vpack.c.b16 %v1424, %v1424
        %1426 = vrot.lane.b32.xlu0 %v1425, 16
        %v1427 = vpop.permute.xlu0 %1426
        %vm1429 = vcmask 191616
        %1430 = vst.msk [vmem:[#allocation4] sm:$0xf] %vm1429, %v1427
        %s1431 = scalar_lea.vmem %s2, 48
        %v1432 = vld [vmem:[%s1431] sm:$0xf]
        %v1433 = vld [vmem:[%s1431 + $0x4] sm:$0xf]
        %v1434 = vld [vmem:[%s1431 + $0x8] sm:$0xf]
        %v1435 = vld [vmem:[%s1431 + $0xc] sm:$0xf]
        %s1436 = scalar_lea.vmem %s3, 3
        %v1437 = vld [vmem:[%s1436] sm:$0x1]
        %v1439 = vlaneseq
        %v1440 = vshrl.u32 %v1439, 7
        %v1441 = vsub.s32 0, %v1440
        %v1442 = vrot.slane %v1437, %v1441
        %v1448 = vunpack.c.l.b16 %v1432
        %v1449 = vunpack.c.l.b16 %v1433
        %v1450 = vunpack.c.l.b16 %v1434
        %v1451 = vunpack.c.l.b16 %v1435
        %v1452 = vpack.c.b16 %v1449, %v1448
        %v1453 = vpack.c.b16 %v1451, %v1450
        %1456 = vmatprep.subr.bf16.mxu0 0
        %1457 = vmatpush1.bf16.msra.mxu0 %v1452
        %1458 = vmatprep.subr.bf16.mxu0 0
        %1459 = vmatpush1.bf16.msra.mxu0 %v1453
        %1460 = vmatprep.subr.bf16.mxu0 0
        %1461 = vmatpush1.bf16.msra.mxu0 0
        %1462 = vmatprep.subr.bf16.mxu0 0
        %1463 = vmatpush1.bf16.msra.mxu0 0
        %1464 = vmatprep.subr.bf16.mxu0 0
        %1465 = vmatpush1.bf16.msra.mxu0 0
        %1466 = vmatprep.subr.bf16.mxu0 0
        %1467 = vmatpush1.bf16.msra.mxu0 0
        %1468 = vmatprep.subr.bf16.mxu0 0
        %1469 = vmatpush1.bf16.msra.mxu0 0
        %1470 = vmatprep.subr.bf16.mxu0 0
        %1471 = vmatpush1.bf16.msra.mxu0 0
        %1472 = vmatprep.subr.bf16.mxu0 0
        %1473 = vmatpush1.bf16.msra.mxu0 0
        %1474 = vmatprep.subr.bf16.mxu0 0
        %1475 = vmatpush1.bf16.msra.mxu0 0
        %1476 = vmatprep.subr.bf16.mxu0 0
        %1477 = vmatpush1.bf16.msra.mxu0 0
        %1478 = vmatprep.subr.bf16.mxu0 0
        %1479 = vmatpush1.bf16.msra.mxu0 0
        %1480 = vmatprep.subr.bf16.mxu0 0
        %1481 = vmatpush1.bf16.msra.mxu0 0
        %1482 = vmatprep.subr.bf16.mxu0 0
        %1483 = vmatpush1.bf16.msra.mxu0 0
        %1484 = vmatprep.subr.bf16.mxu0 0
        %1485 = vmatpush1.bf16.msra.mxu0 0
        %1486 = vmatprep.subr.bf16.mxu0 0
        %1487 = vmatpush1.bf16.msra.mxu0 0
        %1488 = vmatprep.mubr.bf16.mxu0 0
        %1489 = vmatmul.mubr.bf16.gmra.mrb[0].mxu0 %v920
        %v1490 = vpop.f32.mrb[0].mxu0
        %v1491 = vadd.f32 %v1442, %v1490
        %v1492 = vpop.f32.mrb[0].mxu0
        %v1493 = vpop.f32.mrb[0].mxu0
        %v1494 = vpop.f32.mrb[0].mxu0
        %1495 = vdwg.mxu0
        %v1496 = vpack.c.bf16 %v1491, %v1491
        %s1497 = scalar_lea.vmem [#allocation2], 24
        %v1498 = vld [vmem:[%s1497] sm:$0xff]
        %v1500 = vsel %vm964, %v1496, 0
        %v1503 = vsel %vm964, %v1498, 0
        %1505 = vmatprep.subr.bf16.mxu0 0
        %1506 = vmatpush1.bf16.xpose.msra.mxu0 %v1503
        %1507 = vmatprep.subr.bf16.mxu0 0
        %1508 = vmatpush1.bf16.xpose.msra.mxu0 0
        %1509 = vmatprep.subr.bf16.mxu0 0
        %1510 = vmatpush1.bf16.xpose.msra.mxu0 0
        %1511 = vmatprep.subr.bf16.mxu0 0
        %1512 = vmatpush1.bf16.xpose.msra.mxu0 0
        %1513 = vmatprep.subr.bf16.mxu0 0
        %1514 = vmatpush1.bf16.xpose.msra.mxu0 0
        %1515 = vmatprep.subr.bf16.mxu0 0
        %1516 = vmatpush1.bf16.xpose.msra.mxu0 0
        %1517 = vmatprep.subr.bf16.mxu0 0
        %1518 = vmatpush1.bf16.xpose.msra.mxu0 0
        %1519 = vmatprep.subr.bf16.mxu0 0
        %1520 = vmatpush1.bf16.xpose.msra.mxu0 0
        %1521 = vmatprep.subr.bf16.mxu0 0
        %1522 = vmatpush1.bf16.xpose.msra.mxu0 0
        %1523 = vmatprep.subr.bf16.mxu0 0
        %1524 = vmatpush1.bf16.xpose.msra.mxu0 0
        %1525 = vmatprep.subr.bf16.mxu0 0
        %1526 = vmatpush1.bf16.xpose.msra.mxu0 0
        %1527 = vmatprep.subr.bf16.mxu0 0
        %1528 = vmatpush1.bf16.xpose.msra.mxu0 0
        %1529 = vmatprep.subr.bf16.mxu0 0
        %1530 = vmatpush1.bf16.xpose.msra.mxu0 0
        %1531 = vmatprep.subr.bf16.mxu0 0
        %1532 = vmatpush1.bf16.xpose.msra.mxu0 0
        %1533 = vmatprep.subr.bf16.mxu0 0
        %1534 = vmatpush1.bf16.xpose.msra.mxu0 0
        %1535 = vmatprep.subr.bf16.mxu0 0
        %1536 = vmatpush1.bf16.xpose.msra.mxu0 0
        %1537 = vmatprep.mubr.bf16.mxu0 0
        %1538 = vmatmul.mubr.bf16.gmra.mrb[0].mxu0 %v1500
        %v1539 = vpop.f32.mrb[0].mxu0
        %v1540 = vadd.f32 0.0, %v1539
        %v1541 = vpop.f32.mrb[0].mxu0
        %v1542 = vpop.f32.mrb[0].mxu0
        %v1543 = vpop.f32.mrb[0].mxu0
        %1544 = vdwg.mxu0
        %v1545 = vsel %vm1011, %v1540, -inf
        %1546 = vmax.xlane.f32.xlu0 %v1545
        %v1547 = vpop.xlane.xlu0 %1546
        %v1548 = vsub.f32 %v1540, %v1547
        %v1549 = vmul.f32 %v1548, 1.442695
        %v1550 = vpow.pop %v1549
        %v1551 = vsel %vm1011, %v1550, 0.0
        %1552 = vadd.xlane.f32.xlu0 %v1551
        %v1553 = vpop.xlane.xlu0 %1552
        %v1554 = vpack.c.bf16 %v1550, %v1550
        %s1555 = scalar_lea.vmem [#allocation3], 24
        %v1556 = vld [vmem:[%s1555] sm:$0xff]
        %v1558 = vsel %vm1011, %v1554, 0
        %1560 = vmatprep.subr.bf16.mxu0 0
        %1561 = vmatpush1.bf16.msra.mxu0 %v1556
        %1562 = vmatprep.subr.bf16.mxu0 0
        %1563 = vmatpush1.bf16.msra.mxu0 0
        %1564 = vmatprep.subr.bf16.mxu0 0
        %1565 = vmatpush1.bf16.msra.mxu0 0
        %1566 = vmatprep.subr.bf16.mxu0 0
        %1567 = vmatpush1.bf16.msra.mxu0 0
        %1568 = vmatprep.subr.bf16.mxu0 0
        %1569 = vmatpush1.bf16.msra.mxu0 0
        %1570 = vmatprep.subr.bf16.mxu0 0
        %1571 = vmatpush1.bf16.msra.mxu0 0
        %1572 = vmatprep.subr.bf16.mxu0 0
        %1573 = vmatpush1.bf16.msra.mxu0 0
        %1574 = vmatprep.subr.bf16.mxu0 0
        %1575 = vmatpush1.bf16.msra.mxu0 0
        %1576 = vmatprep.subr.bf16.mxu0 0
        %1577 = vmatpush1.bf16.msra.mxu0 0
        %1578 = vmatprep.subr.bf16.mxu0 0
        %1579 = vmatpush1.bf16.msra.mxu0 0
        %1580 = vmatprep.subr.bf16.mxu0 0
        %1581 = vmatpush1.bf16.msra.mxu0 0
        %1582 = vmatprep.subr.bf16.mxu0 0
        %1583 = vmatpush1.bf16.msra.mxu0 0
        %1584 = vmatprep.subr.bf16.mxu0 0
        %1585 = vmatpush1.bf16.msra.mxu0 0
        %1586 = vmatprep.subr.bf16.mxu0 0
        %1587 = vmatpush1.bf16.msra.mxu0 0
        %1588 = vmatprep.subr.bf16.mxu0 0
        %1589 = vmatpush1.bf16.msra.mxu0 0
        %1590 = vmatprep.subr.bf16.mxu0 0
        %1591 = vmatpush1.bf16.msra.mxu0 0
        %1592 = vmatprep.mubr.bf16.mxu0 0
        %1593 = vmatmul.mubr.bf16.gmra.mrb[0].mxu0 %v1558
        %v1594 = vpop.f32.mrb[0].mxu0
        %v1595 = vadd.f32 0.0, %v1594
        %v1596 = vpop.f32.mrb[0].mxu0
        %v1597 = vpop.f32.mrb[0].mxu0
        %v1598 = vpop.f32.mrb[0].mxu0
        %1599 = vdwg.mxu0
        %v1600 = vrcp.pop %v1553
        %v1601 = vmul.f32 %v1595, %v1600
        %v1602 = vpack.c.bf16 %v1601, %v1601
        %v1604 = vunpack.c.l.b16 %v1602
        %v1605 = vpack.c.b16 %v1604, %v1604
        %1606 = vrot.lane.b32.xlu0 %v1605, 24
        %v1607 = vpop.permute.xlu0 %1606
        %vm1609 = vcmask 257216
        %1610 = vst.msk [vmem:[#allocation4] sm:$0xf] %vm1609, %v1607
        %v1611 = vld [vmem:[#allocation4] sm:$0xf]
        %v1612 = vld [vmem:[%s6] sm:$0xf]
        %v1613 = vld [vmem:[%s6 + $0x4] sm:$0xf]
        %v1614 = vld [vmem:[%s6 + $0x8] sm:$0xf]
        %v1615 = vld [vmem:[%s6 + $0xc] sm:$0xf]
        %v1616 = vld [vmem:[%s7] sm:$0x1]
        %v1618 = vlaneseq
        %v1619 = vshrl.u32 %v1618, 7
        %v1620 = vsub.s32 0, %v1619
        %v1621 = vrot.slane %v1616, %v1620
        %v1627 = vunpack.c.l.b16 %v1612
        %v1628 = vunpack.c.l.b16 %v1613
        %v1629 = vunpack.c.l.b16 %v1614
        %v1630 = vunpack.c.l.b16 %v1615
        %v1631 = vpack.c.b16 %v1628, %v1627
        %v1632 = vpack.c.b16 %v1630, %v1629
        %v1636 = vsel %vm880, %v1611, 0
        %1638 = vmatprep.subr.bf16.mxu0 0
        %1639 = vmatpush1.bf16.msra.mxu0 %v1631
        %1640 = vmatprep.subr.bf16.mxu0 0
        %1641 = vmatpush1.bf16.msra.mxu0 %v1632
        %1642 = vmatprep.subr.bf16.mxu0 0
        %1643 = vmatpush1.bf16.msra.mxu0 0
        %1644 = vmatprep.subr.bf16.mxu0 0
        %1645 = vmatpush1.bf16.msra.mxu0 0
        %1646 = vmatprep.subr.bf16.mxu0 0
        %1647 = vmatpush1.bf16.msra.mxu0 0
        %1648 = vmatprep.subr.bf16.mxu0 0
        %1649 = vmatpush1.bf16.msra.mxu0 0
        %1650 = vmatprep.subr.bf16.mxu0 0
        %1651 = vmatpush1.bf16.msra.mxu0 0
        %1652 = vmatprep.subr.bf16.mxu0 0
        %1653 = vmatpush1.bf16.msra.mxu0 0
        %1654 = vmatprep.subr.bf16.mxu0 0
        %1655 = vmatpush1.bf16.msra.mxu0 0
        %1656 = vmatprep.subr.bf16.mxu0 0
        %1657 = vmatpush1.bf16.msra.mxu0 0
        %1658 = vmatprep.subr.bf16.mxu0 0
        %1659 = vmatpush1.bf16.msra.mxu0 0
        %1660 = vmatprep.subr.bf16.mxu0 0
        %1661 = vmatpush1.bf16.msra.mxu0 0
        %1662 = vmatprep.subr.bf16.mxu0 0
        %1663 = vmatpush1.bf16.msra.mxu0 0
        %1664 = vmatprep.subr.bf16.mxu0 0
        %1665 = vmatpush1.bf16.msra.mxu0 0
        %1666 = vmatprep.subr.bf16.mxu0 0
        %1667 = vmatpush1.bf16.msra.mxu0 0
        %1668 = vmatprep.subr.bf16.mxu0 0
        %1669 = vmatpush1.bf16.msra.mxu0 0
        %1670 = vmatprep.mubr.bf16.mxu0 0
        %1671 = vmatmul.mubr.bf16.gmra.mrb[0].mxu0 %v1636
        %v1672 = vpop.f32.mrb[0].mxu0
        %v1673 = vadd.f32 %v1621, %v1672
        %v1674 = vpop.f32.mrb[0].mxu0
        %v1675 = vpop.f32.mrb[0].mxu0
        %v1676 = vpop.f32.mrb[0].mxu0
        %1677 = vdwg.mxu0
        %1678 = vst.msk [vmem:[%s338] sm:$0xff] %vm880, %v1673
        %s1679 = sand.u32 %s228, 1
        %s1680 = scalar_lea.sflag [#allocation6], %s1679
        %s1681 = sand.u32 %s228, 1
        %s1682 = smul.addr %s1681, 8
        %s1683 = scalar_lea.vmem [#allocation5], %s1682
        // Predicated region
        $region57: #{tpu_custom_call.1} parent=51 // pred_check
          %p1684 = pneg %p238
        $region58: #{tpu_custom_call.1} parent=51 // pred_check_branch
          %1686 = sbr.rel (%p1684) target = $region60
        $region59: #{tpu_custom_call.1} parent=51 // pred_region
          %s1687 = smul.u32 %s26, 2
          %s1688 = sadd.s32 %s1687, %s27
          %s1690 = ssub.s32 128, 128
          %1691 = vsyncadd %s1680, %s1690
          %s1692 = smul.addr %s1688, 128
          %s1693 = scalar_lea.hbm %s8, %s1692
          %s1695 = sshll.u32 %s1683, 4
          %s1696 = int_to_ptr.vmem [resolvable:$true] %s1695
          %1698 = dma.vmem_to_hbm [thread:$0]  %s1696, 128, %s1693, %s1680
        $region60: #{tpu_custom_call.1} parent=51 // pred_fallthru
          _
      $region52: #{tpu_custom_call.1} parent=5 // pred_fallthru
        _
      %p1699 = scmp.le.s32.totalorder 2, %s17
      // Predicated region
      $region61: #{tpu_custom_call.1} parent=5 // pred_check
        %p1700 = pneg %p1699
      $region62: #{tpu_custom_call.1} parent=5 // pred_check_branch
        %1702 = sbr.rel (%p1700) target = $region64
      $region63: #{tpu_custom_call.1} parent=5 // pred_region
        %s1703 = ssub.s32 %s17, 2
        // Predicated region
        $region65: #{tpu_custom_call.1} parent=63 // pred_check
          %p1704 = pneg %p244
        $region66: #{tpu_custom_call.1} parent=63 // pred_check_branch
          %1706 = sbr.rel (%p1704) target = $region68
        $region67: #{tpu_custom_call.1} parent=63 // pred_region
          %s1707 = sand.u32 %s229, 1
          %s1708 = scalar_lea.sflag [#allocation6], %s1707
          %s1709 = sand.u32 %s229, 1
          %s1710 = smul.addr %s1709, 8
          %s1711 = scalar_lea.vmem [#allocation5], %s1710
          %1712 = dma.done %s1708, 128
        $region68: #{tpu_custom_call.1} parent=63 // pred_fallthru
          _
      $region64: #{tpu_custom_call.1} parent=5 // pred_fallthru
        _
    $region6: #{tpu_custom_call.1} parent=1 // loop_footer
      %s21 = sadd.s32 1, %s17
    $region7: #{tpu_custom_call.1} parent=1 // loop_footer_branch
      %16 = sbr.rel target = $region3
    $region8: #{tpu_custom_call.1} parent=1 // loop_exit
      _
    %1713 = vsyncpa [#allocation6], 1
    %s1714 = scalar_lea.sflag [#allocation6], 1
    %1715 = vsyncpa %s1714, 1

</llo_original>
